<compile_context>
chip_gen: v7x
topology: tpu7x:2x2x1
jax: 0.10.0
libtpu: 0.0.40
codegen_flags: <defaults>
</compile_context>

<pallas_src>
import functools

import jax
import jax.numpy as jnp
from jax import lax
from jax.experimental import pallas as pl
from jax.experimental.pallas import tpu as pltpu

EPS_LN = 1e-5
EPS_BN = 1e-5


# ----------------------------------------------------------------------------
# Fused kernel: embedding + all GPS layers + classifier head (+ log_softmax)
# ----------------------------------------------------------------------------
def gps_fused_kernel(xf_ref, pe_ref, a_ref, w_in_ref, w_pe_ref, emb_vec_ref,
                     w_qkvg_ref, b_qkvg_ref, wo_ref,
                     w1_ref, w2_ref, b1_ref, lvec_ref,
                     w_head_ref, b_head_ref, o_ref,
                     *, num_layers, c):
    f32 = jnp.float32
    bf16 = jnp.bfloat16

    # ---- input embedding -----------------------------------------------
    ev = emb_vec_ref[...]                      # (4, H): b_in, b_pe, ln_g, ln_b
    b_in, b_pe, ln_g, ln_b = ev[0:1], ev[1:2], ev[2:3], ev[3:4]

    p = jnp.dot(pe_ref[...].astype(bf16), w_pe_ref[...],
                preferred_element_type=f32) + b_pe
    mu = jnp.mean(p, axis=-1, keepdims=True)
    var = jnp.mean((p - mu) ** 2, axis=-1, keepdims=True)
    p = (p - mu) * lax.rsqrt(var + EPS_LN) * ln_g + ln_b

    xo = jnp.dot(xf_ref[...].astype(bf16), w_in_ref[...],
                 preferred_element_type=f32) + b_in
    # In-register concat: both halves live inside one 128-lane tile and the
    # whole forward is fused, so no HBM / extra VMEM round-trip is incurred.
    h = jnp.concatenate([xo, p], axis=-1)      # (N, C) f32

    a_hat = a_ref[...]                         # (N, N) bf16 normalized adjacency

    # ---- GPS layers (unrolled; h stays resident on-chip) ----------------
    # TODO(synk): when num_layers / C grow, move layers onto a grid axis
    # (grid=(L,), per-layer weight BlockSpecs, h in persistent VMEM scratch)
    # and tile A_hat / the node axis so VMEM holds only ~2 layers of weights.
    for l in range(num_layers):
        lv = lvec_ref[l]                       # (6, C) folded BN scale/shift
        bn1_s, bn1_h = lv[0:1], lv[1:2]
        bn2_s, bn2_h = lv[2:3], lv[3:4]
        bn3_s, bn3_h = lv[4:5], lv[5:6]

        # One fused (N,C)@(C,4C) projection: [gcn | q | k | v].
        proj = jnp.dot(h.astype(bf16), w_qkvg_ref[l],
                       preferred_element_type=f32) + b_qkvg_ref[l]
        xw = proj[:, 0:c]
        q = proj[:, c:2 * c]                   # 1/sqrt(C) pre-folded into wq/bq
        k = proj[:, 2 * c:3 * c]
        v = proj[:, 3 * c:4 * c]

        # GCNConv (dense A_hat) + residual + folded BN1 (b_gcn folded in shift).
        h1 = jnp.dot(a_hat, xw.astype(bf16), preferred_element_type=f32) + h
        h1 = h1 * bn1_s + bn1_h

        # Single-head self attention + residual + folded BN2 (bo in shift).
        s = lax.dot_general(q.astype(bf16), k.astype(bf16),
                            (((1,), (1,)), ((), ())),
                            preferred_element_type=f32)
        s = s - jnp.max(s, axis=-1, keepdims=True)
        e = jnp.exp(s)
        e = e * pl.reciprocal(jnp.sum(e, axis=-1, keepdims=True), approx=True)
        ctx = jnp.dot(e.astype(bf16), v.astype(bf16), preferred_element_type=f32)
        h2 = jnp.dot(ctx.astype(bf16), wo_ref[l], preferred_element_type=f32) + h
        h2 = h2 * bn2_s + bn2_h

        # MLP (Lin -> ReLU -> Lin) + residual + folded BN3 (b2 in shift).
        s2 = h1 + h2
        z = jnp.dot(s2.astype(bf16), w1_ref[l],
                    preferred_element_type=f32) + b1_ref[l]
        z = jnp.maximum(z, 0.0)
        m = jnp.dot(z.astype(bf16), w2_ref[l], preferred_element_type=f32)
        h = (s2 + m) * bn3_s + bn3_h

    # ---- classifier head + log_softmax(dim=1) ---------------------------
    # Head is lane-padded to 128; padded columns have bias -1e30 so they
    # contribute exp(...) == 0 and the log_softmax over real classes is exact.
    y = jnp.dot(h.astype(bf16), w_head_ref[...],
                preferred_element_type=f32) + b_head_ref[...]
    y = y - jnp.max(y, axis=1, keepdims=True)
    lse = jnp.log(jnp.sum(jnp.exp(y), axis=1, keepdims=True))
    o_ref[...] = y - lse


# ----------------------------------------------------------------------------
# Parameter init (deterministic, synthetic) — PyTorch-like structure
# ----------------------------------------------------------------------------
def _lin(key, fan_in, fan_out):
    kw, kb = jax.random.split(key)
    lim = 1.0 / jnp.sqrt(jnp.float32(fan_in))
    w = jax.random.uniform(kw, (fan_in, fan_out), jnp.float32, -lim, lim)
    b = jax.random.uniform(kb, (fan_out,), jnp.float32, -lim, lim)
    return w, b


def _bn_params(c):
    return dict(g=jnp.ones((c,), jnp.float32), b=jnp.zeros((c,), jnp.float32),
                rm=jnp.zeros((c,), jnp.float32), rv=jnp.ones((c,), jnp.float32))


def init_params(key, num_features, pe_channels, hidden, num_classes, num_layers):
    c = 2 * hidden
    keys = jax.random.split(key, 3 + num_layers)
    w_pe, b_pe = _lin(keys[0], pe_channels, hidden)
    w_in, b_in = _lin(keys[1], num_features, hidden)
    layers = []
    for l in range(num_layers):
        lk = jax.random.split(keys[3 + l], 8)
        w_gcn, b_gcn = _lin(lk[0], c, c)
        wq, bq = _lin(lk[1], c, c)
        wk, bk = _lin(lk[2], c, c)
        wv, bv = _lin(lk[3], c, c)
        wo, bo = _lin(lk[4], c, c)
        w1, b1 = _lin(lk[5], c, 2 * c)
        w2, b2 = _lin(lk[6], 2 * c, c)
        layers.append(dict(
            w_gcn=w_gcn, b_gcn=b_gcn,
            wq=wq, bq=bq, wk=wk, bk=bk, wv=wv, bv=bv, wo=wo, bo=bo,
            w1=w1, b1=b1, w2=w2, b2=b2,
            bn1=_bn_params(c), bn2=_bn_params(c), bn3=_bn_params(c)))
    w_head, b_head = _lin(keys[2], c, num_classes)
    return dict(w_pe=w_pe, b_pe=b_pe,
                ln_g=jnp.ones((hidden,), jnp.float32),
                ln_b=jnp.zeros((hidden,), jnp.float32),
                w_in=w_in, b_in=b_in,
                layers=layers, w_head=w_head, b_head=b_head)


# ----------------------------------------------------------------------------
# Glue: fold BN (eval) + pre-BN biases + attn scale; pack / stack per layer;
# cast matmul weights to bf16; lane-pad the classifier head.
# ----------------------------------------------------------------------------
def _fold_bn(bn):
    scale = bn["g"] * lax.rsqrt(bn["rv"] + EPS_BN)
    shift = bn["b"] - bn["rm"] * scale
    return scale, shift


def pack_params(params):
    f32, bf16 = jnp.float32, jnp.bfloat16
    layers = params["layers"]
    c = layers[0]["w_gcn"].shape[0]
    attn_scale = 1.0 / float(c) ** 0.5        # heads=1 -> head_dim == C

    w_qkvg, b_qkvg, lvec, wo_l, w1_l, w2_l, b1_l = [], [], [], [], [], [], []
    for lp in layers:
        bn1_s, bn1_h = _fold_bn(lp["bn1"])
        bn2_s, bn2_h = _fold_bn(lp["bn2"])
        bn3_s, bn3_h = _fold_bn(lp["bn3"])
        # Fold pre-BN biases into the BN shifts (b added before scale/shift).
        bn1_h = bn1_h + lp["b_gcn"] * bn1_s
        bn2_h = bn2_h + lp["bo"] * bn2_s
        bn3_h = bn3_h + lp["b2"] * bn3_s
        # Fold 1/sqrt(C) into the q projection.
        wq = lp["wq"] * attn_scale
        bq = lp["bq"] * attn_scale

        w_qkvg.append(jnp.concatenate(
            [lp["w_gcn"], wq, lp["wk"], lp["wv"]], axis=1))          # (C, 4C)
        b_qkvg.append(jnp.concatenate(
            [jnp.zeros_like(bq), bq, lp["bk"], lp["bv"]], axis=0)[None, :])
        lvec.append(jnp.stack(
            [bn1_s, bn1_h, bn2_s, bn2_h, bn3_s, bn3_h], axis=0))     # (6, C)
        wo_l.append(lp["wo"]); w1_l.append(lp["w1"]); w2_l.append(lp["w2"])
        b1_l.append(lp["b1"][None, :])

    emb_vec = jnp.stack([params["b_in"], params["b_pe"],
                         params["ln_g"], params["ln_b"]], axis=0)    # (4, H)

    # Lane-dense classifier head: pad K to a multiple of 128, pad bias = -1e30
    # so padded logits vanish under softmax; slice to num_classes outside.
    num_classes = params["w_head"].shape[1]
    k_pad = max(128, ((num_classes + 127) // 128) * 128)
    w_head_p = jnp.zeros((c, k_pad), f32).at[:, :num_classes].set(params["w_head"])
    b_head_p = jnp.full((k_pad,), -1e30, f32).at[:num_classes].set(params["b_head"])

    return dict(
        w_in=params["w_in"].astype(bf16), w_pe=params["w_pe"].astype(bf16),
        emb_vec=emb_vec.astype(f32),
        w_qkvg=jnp.stack(w_qkvg, 0).astype(bf16),     # (L, C, 4C)
        b_qkvg=jnp.stack(b_qkvg, 0).astype(f32),      # (L, 1, 4C)
        wo=jnp.stack(wo_l, 0).astype(bf16),           # (L, C, C)
        w1=jnp.stack(w1_l, 0).astype(bf16),           # (L, C, 2C)
        w2=jnp.stack(w2_l, 0).astype(bf16),           # (L, 2C, C)
        b1=jnp.stack(b1_l, 0).astype(f32),            # (L, 1, 2C)
        lvec=jnp.stack(lvec, 0).astype(f32),          # (L, 6, C)
        w_head=w_head_p.astype(bf16),                 # (C, k_pad)
        b_head=b_head_p[None, :],                     # (1, k_pad)
        num_classes=num_classes,
    )


# ----------------------------------------------------------------------------
# Glue: dense symmetrically-normalized adjacency (GCNConv gcn_norm semantics).
# Exact for simple graphs (no duplicate edges); deg = in-degree + self loop.
# ----------------------------------------------------------------------------
def gcn_norm_dense(edge_index, num_nodes):
    src, dst = edge_index
    a = jnp.zeros((num_nodes, num_nodes), jnp.float32).at[dst, src].add(1.0)
    a = a + jnp.eye(num_nodes, dtype=jnp.float32)        # add self loops
    deg = jnp.sum(a, axis=1)                             # in-degree incl. loop
    dinv = jnp.where(deg > 0, lax.rsqrt(deg), 0.0)
    return dinv[:, None] * a * dinv[None, :]


# ----------------------------------------------------------------------------
# Forward: ONE fused pallas_call (returns lane-padded logits)
# ----------------------------------------------------------------------------
def gps_forward(packed, x_feat, pe, a_hat):
    n = x_feat.shape[0]
    num_layers, c, _ = packed["w_qkvg"].shape
    k_pad = packed["w_head"].shape[1]

    args = (x_feat, pe, a_hat,
            packed["w_in"], packed["w_pe"], packed["emb_vec"],
            packed["w_qkvg"], packed["b_qkvg"], packed["wo"],
            packed["w1"], packed["w2"], packed["b1"], packed["lvec"],
            packed["w_head"], packed["b_head"])

    kernel = functools.partial(gps_fused_kernel, num_layers=num_layers, c=c)
    vmem = pl.BlockSpec(memory_space=pltpu.MemorySpace.VMEM)
    return pl.pallas_call(
        kernel,
        out_shape=jax.ShapeDtypeStruct((n, k_pad), jnp.float32),
        in_specs=[vmem for _ in args],
        out_specs=vmem,
    )(*args)


# TODO(synk): dropout inside GPSConv is the identity here (eval mode); the
# sparse scatter-based GCN propagation is expressed as a dense A_hat matmul
# (exact for simple graphs).  At large N, tile A_hat with a node grid axis
# (or stream it from HBM via memory_space=pl.ANY + manual double-buffered
# make_async_copy) — its 2*N^2 bf16 bytes are the first thing to blow v7x's
# 64 MiB VMEM; also add a parallel node-row grid axis for the 2 TCs on v7x.

# ----------------------------------------------------------------------------
if __name__ == "__main__":
    key = jax.random.PRNGKey(0)
    k_x, k_pe, k_p = jax.random.split(key, 3)

    N = 16                 # number of nodes
    NUM_FEATURES = 8       # data.num_node_features
    PE_CHANNELS = 4        # laplacian_eigenvector_pe dims
    HIDDEN = 16            # hidden_channels (doubled to 32 inside the model)
    NUM_CLASSES = 5
    NUM_LAYERS = 2

    # Deterministic inputs.
    x_feat = jax.random.normal(k_x, (N, NUM_FEATURES), jnp.float32)
    pe = jax.random.normal(k_pe, (N, PE_CHANNELS), jnp.float32)

    # Deterministic ring graph (both directions), edge_index shape (2, 2N).
    idx = jnp.arange(N, dtype=jnp.int32)
    fwd = jnp.stack([idx, (idx + 1) % N])
    bwd = jnp.stack([(idx + 1) % N, idx])
    edge_index = jnp.concatenate([fwd, bwd], axis=1)
    a_hat = gcn_norm_dense(edge_index, N).astype(jnp.bfloat16)

    params = init_params(k_p, NUM_FEATURES, PE_CHANNELS, HIDDEN,
                         NUM_CLASSES, NUM_LAYERS)
    packed = pack_params(params)

    fwd_fn = jax.jit(
        lambda pk, xf, p, a: gps_forward(pk, xf, p, a)[:, :NUM_CLASSES])
    out = fwd_fn(packed, x_feat, pe, a_hat)
    out = jax.block_until_ready(out)

    assert out.shape == (N, NUM_CLASSES)
    assert bool(jnp.all(jnp.isfinite(out)))
    # log-softmax rows must sum to ~1 in prob space
    assert bool(jnp.allclose(jnp.sum(jnp.exp(out), axis=1), 1.0, atol=1e-4))
    print("KERNEL_OK")
</pallas_src>

<mosaic_0001>
module attributes {stable_mosaic.version = 11 : i64} {
  func.func @gps_fused_kernel(%arg0: memref<16x8xf32, #tpu.memory_space<vmem>>, %arg1: memref<16x4xf32, #tpu.memory_space<vmem>>, %arg2: memref<16x16xbf16, #tpu.memory_space<vmem>>, %arg3: memref<8x16xbf16, #tpu.memory_space<vmem>>, %arg4: memref<4x16xbf16, #tpu.memory_space<vmem>>, %arg5: memref<4x16xf32, #tpu.memory_space<vmem>>, %arg6: memref<2x32x128xbf16, #tpu.memory_space<vmem>>, %arg7: memref<2x1x128xf32, #tpu.memory_space<vmem>>, %arg8: memref<2x32x32xbf16, #tpu.memory_space<vmem>>, %arg9: memref<2x32x64xbf16, #tpu.memory_space<vmem>>, %arg10: memref<2x64x32xbf16, #tpu.memory_space<vmem>>, %arg11: memref<2x1x64xf32, #tpu.memory_space<vmem>>, %arg12: memref<2x6x32xf32, #tpu.memory_space<vmem>>, %arg13: memref<32x128xbf16, #tpu.memory_space<vmem>>, %arg14: memref<1x128xf32, #tpu.memory_space<vmem>>, %arg15: memref<16x128xf32, #tpu.memory_space<vmem>>) attributes {dimension_semantics = [], scalar_prefetch = 0 : i64, scratch_operands = 0 : i64, tpu.core_type = #tpu.core_type<tc>} {
    %c0 = arith.constant 0 : index
    %c0_0 = arith.constant 0 : index
    %0 = vector.load %arg5[%c0, %c0_0] : memref<4x16xf32, #tpu.memory_space<vmem>>, vector<4x16xf32>
    %1 = vector.extract_strided_slice %0 {offsets = [0, 0], sizes = [1, 16], strides = [1, 1]} : vector<4x16xf32> to vector<1x16xf32>
    %2 = vector.extract_strided_slice %0 {offsets = [1, 0], sizes = [1, 16], strides = [1, 1]} : vector<4x16xf32> to vector<1x16xf32>
    %3 = vector.extract_strided_slice %0 {offsets = [2, 0], sizes = [1, 16], strides = [1, 1]} : vector<4x16xf32> to vector<1x16xf32>
    %4 = vector.extract_strided_slice %0 {offsets = [3, 0], sizes = [1, 16], strides = [1, 1]} : vector<4x16xf32> to vector<1x16xf32>
    %c0_1 = arith.constant 0 : index
    %c0_2 = arith.constant 0 : index
    %5 = vector.load %arg1[%c0_1, %c0_2] : memref<16x4xf32, #tpu.memory_space<vmem>>, vector<16x4xf32>
    %6 = arith.truncf %5 : vector<16x4xf32> to vector<16x4xbf16>
    %c0_3 = arith.constant 0 : index
    %c0_4 = arith.constant 0 : index
    %7 = vector.load %arg4[%c0_3, %c0_4] : memref<4x16xbf16, #tpu.memory_space<vmem>>, vector<4x16xbf16>
    %cst = arith.constant dense<0.000000e+00> : vector<16x16xf32>
    %8 = tpu.matmul %6, %7, %cst {dimension_numbers = #tpu.dot_dimension_numbers<[1], [0], [0], [1], [0, 0, 1, 1], [], []>} : vector<16x4xbf16>, vector<4x16xbf16>, vector<16x16xf32> -> vector<16x16xf32>
    %9 = vector.broadcast %2 : vector<1x16xf32> to vector<16x16xf32>
    %10 = arith.addf %8, %9 : vector<16x16xf32>
    %cst_5 = arith.constant dense<0.000000e+00> : vector<16xf32>
    %11 = vector.multi_reduction <add>, %10, %cst_5 [1] : vector<16x16xf32> to vector<16xf32>
    %12 = vector.shape_cast %11 : vector<16xf32> to vector<16x1xf32>
    %cst_6 = arith.constant 1.600000e+01 : f32
    %13 = vector.broadcast %cst_6 : f32 to vector<16x1xf32>
    %14 = arith.divf %12, %13 : vector<16x1xf32>
    %15 = vector.broadcast %14 : vector<16x1xf32> to vector<16x16xf32>
    %16 = arith.subf %10, %15 : vector<16x16xf32>
    %17 = arith.mulf %16, %16 : vector<16x16xf32>
    %cst_7 = arith.constant dense<0.000000e+00> : vector<16xf32>
    %18 = vector.multi_reduction <add>, %17, %cst_7 [1] : vector<16x16xf32> to vector<16xf32>
    %19 = vector.shape_cast %18 : vector<16xf32> to vector<16x1xf32>
    %cst_8 = arith.constant 1.600000e+01 : f32
    %20 = vector.broadcast %cst_8 : f32 to vector<16x1xf32>
    %21 = arith.divf %19, %20 : vector<16x1xf32>
    %22 = vector.broadcast %14 : vector<16x1xf32> to vector<16x16xf32>
    %23 = arith.subf %10, %22 : vector<16x16xf32>
    %cst_9 = arith.constant 9.99999974E-6 : f32
    %24 = vector.broadcast %cst_9 : f32 to vector<16x1xf32>
    %25 = arith.addf %21, %24 : vector<16x1xf32>
    %26 = math.rsqrt %25 : vector<16x1xf32>
    %27 = vector.broadcast %26 : vector<16x1xf32> to vector<16x16xf32>
    %28 = arith.mulf %23, %27 : vector<16x16xf32>
    %29 = vector.broadcast %3 : vector<1x16xf32> to vector<16x16xf32>
    %30 = arith.mulf %28, %29 : vector<16x16xf32>
    %31 = vector.broadcast %4 : vector<1x16xf32> to vector<16x16xf32>
    %32 = arith.addf %30, %31 : vector<16x16xf32>
    %c0_10 = arith.constant 0 : index
    %c0_11 = arith.constant 0 : index
    %33 = vector.load %arg0[%c0_10, %c0_11] : memref<16x8xf32, #tpu.memory_space<vmem>>, vector<16x8xf32>
    %34 = arith.truncf %33 : vector<16x8xf32> to vector<16x8xbf16>
    %c0_12 = arith.constant 0 : index
    %c0_13 = arith.constant 0 : index
    %35 = vector.load %arg3[%c0_12, %c0_13] : memref<8x16xbf16, #tpu.memory_space<vmem>>, vector<8x16xbf16>
    %cst_14 = arith.constant dense<0.000000e+00> : vector<16x16xf32>
    %36 = tpu.matmul %34, %35, %cst_14 {dimension_numbers = #tpu.dot_dimension_numbers<[1], [0], [0], [1], [0, 0, 1, 1], [], []>} : vector<16x8xbf16>, vector<8x16xbf16>, vector<16x16xf32> -> vector<16x16xf32>
    %37 = vector.broadcast %1 : vector<1x16xf32> to vector<16x16xf32>
    %38 = arith.addf %36, %37 : vector<16x16xf32>
    %39 = tpu.concatenate %38, %32 in 1 : vector<16x16xf32>, vector<16x16xf32> -> vector<16x32xf32>
    %c0_15 = arith.constant 0 : index
    %c0_16 = arith.constant 0 : index
    %40 = vector.load %arg2[%c0_15, %c0_16] : memref<16x16xbf16, #tpu.memory_space<vmem>>, vector<16x16xbf16>
    %c0_17 = arith.constant 0 : index
    %c0_18 = arith.constant 0 : index
    %c0_19 = arith.constant 0 : index
    %41 = vector.load %arg12[%c0_17, %c0_18, %c0_19] : memref<2x6x32xf32, #tpu.memory_space<vmem>>, vector<1x6x32xf32>
    %42 = vector.shape_cast %41 : vector<1x6x32xf32> to vector<6x32xf32>
    %43 = vector.extract_strided_slice %42 {offsets = [0, 0], sizes = [1, 32], strides = [1, 1]} : vector<6x32xf32> to vector<1x32xf32>
    %44 = vector.extract_strided_slice %42 {offsets = [1, 0], sizes = [1, 32], strides = [1, 1]} : vector<6x32xf32> to vector<1x32xf32>
    %45 = vector.extract_strided_slice %42 {offsets = [2, 0], sizes = [1, 32], strides = [1, 1]} : vector<6x32xf32> to vector<1x32xf32>
    %46 = vector.extract_strided_slice %42 {offsets = [3, 0], sizes = [1, 32], strides = [1, 1]} : vector<6x32xf32> to vector<1x32xf32>
    %47 = vector.extract_strided_slice %42 {offsets = [4, 0], sizes = [1, 32], strides = [1, 1]} : vector<6x32xf32> to vector<1x32xf32>
    %48 = vector.extract_strided_slice %42 {offsets = [5, 0], sizes = [1, 32], strides = [1, 1]} : vector<6x32xf32> to vector<1x32xf32>
    %49 = arith.truncf %39 : vector<16x32xf32> to vector<16x32xbf16>
    %c0_20 = arith.constant 0 : index
    %c0_21 = arith.constant 0 : index
    %c0_22 = arith.constant 0 : index
    %50 = vector.load %arg6[%c0_20, %c0_21, %c0_22] : memref<2x32x128xbf16, #tpu.memory_space<vmem>>, vector<1x32x128xbf16>
    %51 = vector.shape_cast %50 : vector<1x32x128xbf16> to vector<32x128xbf16>
    %cst_23 = arith.constant dense<0.000000e+00> : vector<16x128xf32>
    %52 = tpu.matmul %49, %51, %cst_23 {dimension_numbers = #tpu.dot_dimension_numbers<[1], [0], [0], [1], [0, 0, 1, 1], [], []>} : vector<16x32xbf16>, vector<32x128xbf16>, vector<16x128xf32> -> vector<16x128xf32>
    %c0_24 = arith.constant 0 : index
    %c0_25 = arith.constant 0 : index
    %c0_26 = arith.constant 0 : index
    %53 = vector.load %arg7[%c0_24, %c0_25, %c0_26] : memref<2x1x128xf32, #tpu.memory_space<vmem>>, vector<1x1x128xf32>
    %54 = vector.shape_cast %53 : vector<1x1x128xf32> to vector<1x128xf32>
    %55 = vector.broadcast %54 : vector<1x128xf32> to vector<16x128xf32>
    %56 = arith.addf %52, %55 : vector<16x128xf32>
    %57 = vector.extract_strided_slice %56 {offsets = [0, 0], sizes = [16, 32], strides = [1, 1]} : vector<16x128xf32> to vector<16x32xf32>
    %58 = vector.extract_strided_slice %56 {offsets = [0, 32], sizes = [16, 32], strides = [1, 1]} : vector<16x128xf32> to vector<16x32xf32>
    %59 = vector.extract_strided_slice %56 {offsets = [0, 64], sizes = [16, 32], strides = [1, 1]} : vector<16x128xf32> to vector<16x32xf32>
    %60 = vector.extract_strided_slice %56 {offsets = [0, 96], sizes = [16, 32], strides = [1, 1]} : vector<16x128xf32> to vector<16x32xf32>
    %61 = arith.truncf %57 : vector<16x32xf32> to vector<16x32xbf16>
    %cst_27 = arith.constant dense<0.000000e+00> : vector<16x32xf32>
    %62 = tpu.matmul %40, %61, %cst_27 {dimension_numbers = #tpu.dot_dimension_numbers<[1], [0], [0], [1], [0, 0, 1, 1], [], []>} : vector<16x16xbf16>, vector<16x32xbf16>, vector<16x32xf32> -> vector<16x32xf32>
    %63 = arith.addf %62, %39 : vector<16x32xf32>
    %64 = vector.broadcast %43 : vector<1x32xf32> to vector<16x32xf32>
    %65 = arith.mulf %63, %64 : vector<16x32xf32>
    %66 = vector.broadcast %44 : vector<1x32xf32> to vector<16x32xf32>
    %67 = arith.addf %65, %66 : vector<16x32xf32>
    %68 = arith.truncf %58 : vector<16x32xf32> to vector<16x32xbf16>
    %69 = arith.truncf %59 : vector<16x32xf32> to vector<16x32xbf16>
    %cst_28 = arith.constant dense<0.000000e+00> : vector<16x16xf32>
    %70 = tpu.matmul %68, %69, %cst_28 {dimension_numbers = #tpu.dot_dimension_numbers<[1], [1], [0], [0], [0, 0, 1, 0], [], []>} : vector<16x32xbf16>, vector<16x32xbf16>, vector<16x16xf32> -> vector<16x16xf32>
    %cst_29 = arith.constant dense<0xFF800000> : vector<16xf32>
    %71 = vector.multi_reduction <maximumf>, %70, %cst_29 [1] : vector<16x16xf32> to vector<16xf32>
    %72 = vector.shape_cast %71 : vector<16xf32> to vector<16x1xf32>
    %73 = vector.broadcast %72 : vector<16x1xf32> to vector<16x16xf32>
    %74 = arith.subf %70, %73 : vector<16x16xf32>
    %75 = math.exp %74 : vector<16x16xf32>
    %cst_30 = arith.constant dense<0.000000e+00> : vector<16xf32>
    %76 = vector.multi_reduction <add>, %75, %cst_30 [1] : vector<16x16xf32> to vector<16xf32>
    %77 = vector.shape_cast %76 : vector<16xf32> to vector<16x1xf32>
    %78 = tpu.reciprocal %77 {approx = true} : vector<16x1xf32> -> vector<16x1xf32>
    %79 = vector.broadcast %78 : vector<16x1xf32> to vector<16x16xf32>
    %80 = arith.mulf %75, %79 : vector<16x16xf32>
    %81 = arith.truncf %80 : vector<16x16xf32> to vector<16x16xbf16>
    %82 = arith.truncf %60 : vector<16x32xf32> to vector<16x32xbf16>
    %cst_31 = arith.constant dense<0.000000e+00> : vector<16x32xf32>
    %83 = tpu.matmul %81, %82, %cst_31 {dimension_numbers = #tpu.dot_dimension_numbers<[1], [0], [0], [1], [0, 0, 1, 1], [], []>} : vector<16x16xbf16>, vector<16x32xbf16>, vector<16x32xf32> -> vector<16x32xf32>
    %84 = arith.truncf %83 : vector<16x32xf32> to vector<16x32xbf16>
    %c0_32 = arith.constant 0 : index
    %c0_33 = arith.constant 0 : index
    %c0_34 = arith.constant 0 : index
    %85 = vector.load %arg8[%c0_32, %c0_33, %c0_34] : memref<2x32x32xbf16, #tpu.memory_space<vmem>>, vector<1x32x32xbf16>
    %86 = vector.shape_cast %85 : vector<1x32x32xbf16> to vector<32x32xbf16>
    %cst_35 = arith.constant dense<0.000000e+00> : vector<16x32xf32>
    %87 = tpu.matmul %84, %86, %cst_35 {dimension_numbers = #tpu.dot_dimension_numbers<[1], [0], [0], [1], [0, 0, 1, 1], [], []>} : vector<16x32xbf16>, vector<32x32xbf16>, vector<16x32xf32> -> vector<16x32xf32>
    %88 = arith.addf %87, %39 : vector<16x32xf32>
    %89 = vector.broadcast %45 : vector<1x32xf32> to vector<16x32xf32>
    %90 = arith.mulf %88, %89 : vector<16x32xf32>
    %91 = vector.broadcast %46 : vector<1x32xf32> to vector<16x32xf32>
    %92 = arith.addf %90, %91 : vector<16x32xf32>
    %93 = arith.addf %67, %92 : vector<16x32xf32>
    %94 = arith.truncf %93 : vector<16x32xf32> to vector<16x32xbf16>
    %c0_36 = arith.constant 0 : index
    %c0_37 = arith.constant 0 : index
    %c0_38 = arith.constant 0 : index
    %95 = vector.load %arg9[%c0_36, %c0_37, %c0_38] : memref<2x32x64xbf16, #tpu.memory_space<vmem>>, vector<1x32x64xbf16>
    %96 = vector.shape_cast %95 : vector<1x32x64xbf16> to vector<32x64xbf16>
    %cst_39 = arith.constant dense<0.000000e+00> : vector<16x64xf32>
    %97 = tpu.matmul %94, %96, %cst_39 {dimension_numbers = #tpu.dot_dimension_numbers<[1], [0], [0], [1], [0, 0, 1, 1], [], []>} : vector<16x32xbf16>, vector<32x64xbf16>, vector<16x64xf32> -> vector<16x64xf32>
    %c0_40 = arith.constant 0 : index
    %c0_41 = arith.constant 0 : index
    %c0_42 = arith.constant 0 : index
    %98 = vector.load %arg11[%c0_40, %c0_41, %c0_42] : memref<2x1x64xf32, #tpu.memory_space<vmem>>, vector<1x1x64xf32>
    %99 = vector.shape_cast %98 : vector<1x1x64xf32> to vector<1x64xf32>
    %100 = vector.broadcast %99 : vector<1x64xf32> to vector<16x64xf32>
    %101 = arith.addf %97, %100 : vector<16x64xf32>
    %cst_43 = arith.constant 0.000000e+00 : f32
    %102 = vector.broadcast %cst_43 : f32 to vector<16x64xf32>
    %103 = arith.maximumf %101, %102 : vector<16x64xf32>
    %104 = arith.truncf %103 : vector<16x64xf32> to vector<16x64xbf16>
    %c0_44 = arith.constant 0 : index
    %c0_45 = arith.constant 0 : index
    %c0_46 = arith.constant 0 : index
    %105 = vector.load %arg10[%c0_44, %c0_45, %c0_46] : memref<2x64x32xbf16, #tpu.memory_space<vmem>>, vector<1x64x32xbf16>
    %106 = vector.shape_cast %105 : vector<1x64x32xbf16> to vector<64x32xbf16>
    %cst_47 = arith.constant dense<0.000000e+00> : vector<16x32xf32>
    %107 = tpu.matmul %104, %106, %cst_47 {dimension_numbers = #tpu.dot_dimension_numbers<[1], [0], [0], [1], [0, 0, 1, 1], [], []>} : vector<16x64xbf16>, vector<64x32xbf16>, vector<16x32xf32> -> vector<16x32xf32>
    %108 = arith.addf %93, %107 : vector<16x32xf32>
    %109 = vector.broadcast %47 : vector<1x32xf32> to vector<16x32xf32>
    %110 = arith.mulf %108, %109 : vector<16x32xf32>
    %111 = vector.broadcast %48 : vector<1x32xf32> to vector<16x32xf32>
    %112 = arith.addf %110, %111 : vector<16x32xf32>
    %c1 = arith.constant 1 : index
    %c0_48 = arith.constant 0 : index
    %c0_49 = arith.constant 0 : index
    %113 = vector.load %arg12[%c1, %c0_48, %c0_49] : memref<2x6x32xf32, #tpu.memory_space<vmem>>, vector<1x6x32xf32>
    %114 = vector.shape_cast %113 : vector<1x6x32xf32> to vector<6x32xf32>
    %115 = vector.extract_strided_slice %114 {offsets = [0, 0], sizes = [1, 32], strides = [1, 1]} : vector<6x32xf32> to vector<1x32xf32>
    %116 = vector.extract_strided_slice %114 {offsets = [1, 0], sizes = [1, 32], strides = [1, 1]} : vector<6x32xf32> to vector<1x32xf32>
    %117 = vector.extract_strided_slice %114 {offsets = [2, 0], sizes = [1, 32], strides = [1, 1]} : vector<6x32xf32> to vector<1x32xf32>
    %118 = vector.extract_strided_slice %114 {offsets = [3, 0], sizes = [1, 32], strides = [1, 1]} : vector<6x32xf32> to vector<1x32xf32>
    %119 = vector.extract_strided_slice %114 {offsets = [4, 0], sizes = [1, 32], strides = [1, 1]} : vector<6x32xf32> to vector<1x32xf32>
    %120 = vector.extract_strided_slice %114 {offsets = [5, 0], sizes = [1, 32], strides = [1, 1]} : vector<6x32xf32> to vector<1x32xf32>
    %121 = arith.truncf %112 : vector<16x32xf32> to vector<16x32xbf16>
    %c1_50 = arith.constant 1 : index
    %c0_51 = arith.constant 0 : index
    %c0_52 = arith.constant 0 : index
    %122 = vector.load %arg6[%c1_50, %c0_51, %c0_52] : memref<2x32x128xbf16, #tpu.memory_space<vmem>>, vector<1x32x128xbf16>
    %123 = vector.shape_cast %122 : vector<1x32x128xbf16> to vector<32x128xbf16>
    %cst_53 = arith.constant dense<0.000000e+00> : vector<16x128xf32>
    %124 = tpu.matmul %121, %123, %cst_53 {dimension_numbers = #tpu.dot_dimension_numbers<[1], [0], [0], [1], [0, 0, 1, 1], [], []>} : vector<16x32xbf16>, vector<32x128xbf16>, vector<16x128xf32> -> vector<16x128xf32>
    %c1_54 = arith.constant 1 : index
    %c0_55 = arith.constant 0 : index
    %c0_56 = arith.constant 0 : index
    %125 = vector.load %arg7[%c1_54, %c0_55, %c0_56] : memref<2x1x128xf32, #tpu.memory_space<vmem>>, vector<1x1x128xf32>
    %126 = vector.shape_cast %125 : vector<1x1x128xf32> to vector<1x128xf32>
    %127 = vector.broadcast %126 : vector<1x128xf32> to vector<16x128xf32>
    %128 = arith.addf %124, %127 : vector<16x128xf32>
    %129 = vector.extract_strided_slice %128 {offsets = [0, 0], sizes = [16, 32], strides = [1, 1]} : vector<16x128xf32> to vector<16x32xf32>
    %130 = vector.extract_strided_slice %128 {offsets = [0, 32], sizes = [16, 32], strides = [1, 1]} : vector<16x128xf32> to vector<16x32xf32>
    %131 = vector.extract_strided_slice %128 {offsets = [0, 64], sizes = [16, 32], strides = [1, 1]} : vector<16x128xf32> to vector<16x32xf32>
    %132 = vector.extract_strided_slice %128 {offsets = [0, 96], sizes = [16, 32], strides = [1, 1]} : vector<16x128xf32> to vector<16x32xf32>
    %133 = arith.truncf %129 : vector<16x32xf32> to vector<16x32xbf16>
    %cst_57 = arith.constant dense<0.000000e+00> : vector<16x32xf32>
    %134 = tpu.matmul %40, %133, %cst_57 {dimension_numbers = #tpu.dot_dimension_numbers<[1], [0], [0], [1], [0, 0, 1, 1], [], []>} : vector<16x16xbf16>, vector<16x32xbf16>, vector<16x32xf32> -> vector<16x32xf32>
    %135 = arith.addf %134, %112 : vector<16x32xf32>
    %136 = vector.broadcast %115 : vector<1x32xf32> to vector<16x32xf32>
    %137 = arith.mulf %135, %136 : vector<16x32xf32>
    %138 = vector.broadcast %116 : vector<1x32xf32> to vector<16x32xf32>
    %139 = arith.addf %137, %138 : vector<16x32xf32>
    %140 = arith.truncf %130 : vector<16x32xf32> to vector<16x32xbf16>
    %141 = arith.truncf %131 : vector<16x32xf32> to vector<16x32xbf16>
    %cst_58 = arith.constant dense<0.000000e+00> : vector<16x16xf32>
    %142 = tpu.matmul %140, %141, %cst_58 {dimension_numbers = #tpu.dot_dimension_numbers<[1], [1], [0], [0], [0, 0, 1, 0], [], []>} : vector<16x32xbf16>, vector<16x32xbf16>, vector<16x16xf32> -> vector<16x16xf32>
    %cst_59 = arith.constant dense<0xFF800000> : vector<16xf32>
    %143 = vector.multi_reduction <maximumf>, %142, %cst_59 [1] : vector<16x16xf32> to vector<16xf32>
    %144 = vector.shape_cast %143 : vector<16xf32> to vector<16x1xf32>
    %145 = vector.broadcast %144 : vector<16x1xf32> to vector<16x16xf32>
    %146 = arith.subf %142, %145 : vector<16x16xf32>
    %147 = math.exp %146 : vector<16x16xf32>
    %cst_60 = arith.constant dense<0.000000e+00> : vector<16xf32>
    %148 = vector.multi_reduction <add>, %147, %cst_60 [1] : vector<16x16xf32> to vector<16xf32>
    %149 = vector.shape_cast %148 : vector<16xf32> to vector<16x1xf32>
    %150 = tpu.reciprocal %149 {approx = true} : vector<16x1xf32> -> vector<16x1xf32>
    %151 = vector.broadcast %150 : vector<16x1xf32> to vector<16x16xf32>
    %152 = arith.mulf %147, %151 : vector<16x16xf32>
    %153 = arith.truncf %152 : vector<16x16xf32> to vector<16x16xbf16>
    %154 = arith.truncf %132 : vector<16x32xf32> to vector<16x32xbf16>
    %cst_61 = arith.constant dense<0.000000e+00> : vector<16x32xf32>
    %155 = tpu.matmul %153, %154, %cst_61 {dimension_numbers = #tpu.dot_dimension_numbers<[1], [0], [0], [1], [0, 0, 1, 1], [], []>} : vector<16x16xbf16>, vector<16x32xbf16>, vector<16x32xf32> -> vector<16x32xf32>
    %156 = arith.truncf %155 : vector<16x32xf32> to vector<16x32xbf16>
    %c1_62 = arith.constant 1 : index
    %c0_63 = arith.constant 0 : index
    %c0_64 = arith.constant 0 : index
    %157 = vector.load %arg8[%c1_62, %c0_63, %c0_64] : memref<2x32x32xbf16, #tpu.memory_space<vmem>>, vector<1x32x32xbf16>
    %158 = vector.shape_cast %157 : vector<1x32x32xbf16> to vector<32x32xbf16>
    %cst_65 = arith.constant dense<0.000000e+00> : vector<16x32xf32>
    %159 = tpu.matmul %156, %158, %cst_65 {dimension_numbers = #tpu.dot_dimension_numbers<[1], [0], [0], [1], [0, 0, 1, 1], [], []>} : vector<16x32xbf16>, vector<32x32xbf16>, vector<16x32xf32> -> vector<16x32xf32>
    %160 = arith.addf %159, %112 : vector<16x32xf32>
    %161 = vector.broadcast %117 : vector<1x32xf32> to vector<16x32xf32>
    %162 = arith.mulf %160, %161 : vector<16x32xf32>
    %163 = vector.broadcast %118 : vector<1x32xf32> to vector<16x32xf32>
    %164 = arith.addf %162, %163 : vector<16x32xf32>
    %165 = arith.addf %139, %164 : vector<16x32xf32>
    %166 = arith.truncf %165 : vector<16x32xf32> to vector<16x32xbf16>
    %c1_66 = arith.constant 1 : index
    %c0_67 = arith.constant 0 : index
    %c0_68 = arith.constant 0 : index
    %167 = vector.load %arg9[%c1_66, %c0_67, %c0_68] : memref<2x32x64xbf16, #tpu.memory_space<vmem>>, vector<1x32x64xbf16>
    %168 = vector.shape_cast %167 : vector<1x32x64xbf16> to vector<32x64xbf16>
    %cst_69 = arith.constant dense<0.000000e+00> : vector<16x64xf32>
    %169 = tpu.matmul %166, %168, %cst_69 {dimension_numbers = #tpu.dot_dimension_numbers<[1], [0], [0], [1], [0, 0, 1, 1], [], []>} : vector<16x32xbf16>, vector<32x64xbf16>, vector<16x64xf32> -> vector<16x64xf32>
    %c1_70 = arith.constant 1 : index
    %c0_71 = arith.constant 0 : index
    %c0_72 = arith.constant 0 : index
    %170 = vector.load %arg11[%c1_70, %c0_71, %c0_72] : memref<2x1x64xf32, #tpu.memory_space<vmem>>, vector<1x1x64xf32>
    %171 = vector.shape_cast %170 : vector<1x1x64xf32> to vector<1x64xf32>
    %172 = vector.broadcast %171 : vector<1x64xf32> to vector<16x64xf32>
    %173 = arith.addf %169, %172 : vector<16x64xf32>
    %cst_73 = arith.constant 0.000000e+00 : f32
    %174 = vector.broadcast %cst_73 : f32 to vector<16x64xf32>
    %175 = arith.maximumf %173, %174 : vector<16x64xf32>
    %176 = arith.truncf %175 : vector<16x64xf32> to vector<16x64xbf16>
    %c1_74 = arith.constant 1 : index
    %c0_75 = arith.constant 0 : index
    %c0_76 = arith.constant 0 : index
    %177 = vector.load %arg10[%c1_74, %c0_75, %c0_76] : memref<2x64x32xbf16, #tpu.memory_space<vmem>>, vector<1x64x32xbf16>
    %178 = vector.shape_cast %177 : vector<1x64x32xbf16> to vector<64x32xbf16>
    %cst_77 = arith.constant dense<0.000000e+00> : vector<16x32xf32>
    %179 = tpu.matmul %176, %178, %cst_77 {dimension_numbers = #tpu.dot_dimension_numbers<[1], [0], [0], [1], [0, 0, 1, 1], [], []>} : vector<16x64xbf16>, vector<64x32xbf16>, vector<16x32xf32> -> vector<16x32xf32>
    %180 = arith.addf %165, %179 : vector<16x32xf32>
    %181 = vector.broadcast %119 : vector<1x32xf32> to vector<16x32xf32>
    %182 = arith.mulf %180, %181 : vector<16x32xf32>
    %183 = vector.broadcast %120 : vector<1x32xf32> to vector<16x32xf32>
    %184 = arith.addf %182, %183 : vector<16x32xf32>
    %185 = arith.truncf %184 : vector<16x32xf32> to vector<16x32xbf16>
    %c0_78 = arith.constant 0 : index
    %c0_79 = arith.constant 0 : index
    %186 = vector.load %arg13[%c0_78, %c0_79] : memref<32x128xbf16, #tpu.memory_space<vmem>>, vector<32x128xbf16>
    %cst_80 = arith.constant dense<0.000000e+00> : vector<16x128xf32>
    %187 = tpu.matmul %185, %186, %cst_80 {dimension_numbers = #tpu.dot_dimension_numbers<[1], [0], [0], [1], [0, 0, 1, 1], [], []>} : vector<16x32xbf16>, vector<32x128xbf16>, vector<16x128xf32> -> vector<16x128xf32>
    %c0_81 = arith.constant 0 : index
    %c0_82 = arith.constant 0 : index
    %188 = vector.load %arg14[%c0_81, %c0_82] : memref<1x128xf32, #tpu.memory_space<vmem>>, vector<1x128xf32>
    %189 = vector.broadcast %188 : vector<1x128xf32> to vector<16x128xf32>
    %190 = arith.addf %187, %189 : vector<16x128xf32>
    %cst_83 = arith.constant dense<0xFF800000> : vector<16xf32>
    %191 = vector.multi_reduction <maximumf>, %190, %cst_83 [1] : vector<16x128xf32> to vector<16xf32>
    %192 = vector.shape_cast %191 : vector<16xf32> to vector<16x1xf32>
    %193 = vector.broadcast %192 : vector<16x1xf32> to vector<16x128xf32>
    %194 = arith.subf %190, %193 : vector<16x128xf32>
    %195 = math.exp %194 : vector<16x128xf32>
    %cst_84 = arith.constant dense<0.000000e+00> : vector<16xf32>
    %196 = vector.multi_reduction <add>, %195, %cst_84 [1] : vector<16x128xf32> to vector<16xf32>
    %197 = vector.shape_cast %196 : vector<16xf32> to vector<16x1xf32>
    %198 = math.log %197 : vector<16x1xf32>
    %199 = vector.broadcast %198 : vector<16x1xf32> to vector<16x128xf32>
    %200 = arith.subf %194, %199 : vector<16x128xf32>
    %c0_85 = arith.constant 0 : index
    %c0_86 = arith.constant 0 : index
    %201 = vector.load %arg15[%c0_85, %c0_86] : memref<16x128xf32, #tpu.memory_space<vmem>>, vector<16x128xf32>
    tpu.vector_store %arg15[%c0_85, %c0_86], %200 {strides = array<i32>} : memref<16x128xf32, #tpu.memory_space<vmem>>, vector<16x128xf32>,
    return
  }
}

</mosaic_0001>

<llo_original>
// kernel: _lambda_.1
$region0: #{_lambda_.1}
  #allocation0 [shape = 'u32[]', space=smem, size = 0x4, offset = 0x4, fixed_abs, tag = 'smem constant byte address 0x4 - core index']
  #allocation1 [shape = 'u32[144,128]{1,0:T(1,128)}', space=vmem, size = 0x12000, scoped, tag = 'internal scratch']
  %s0 = inlined_call_operand.vmem [shape: f32[16,8], index: 0, kind: input, shape index: {}]
  %s1 = inlined_call_operand.vmem [shape: f32[16,4], index: 1, kind: input, shape index: {}]
  %s2 = inlined_call_operand.vmem [shape: bf16[16,16], index: 2, kind: input, shape index: {}]
  %s3 = inlined_call_operand.vmem [shape: bf16[8,16], index: 3, kind: input, shape index: {}]
  %s4 = inlined_call_operand.vmem [shape: bf16[4,16], index: 4, kind: input, shape index: {}]
  %s5 = inlined_call_operand.vmem [shape: f32[4,16], index: 5, kind: input, shape index: {}]
  %s6 = inlined_call_operand.vmem [shape: bf16[2,32,128], index: 6, kind: input, shape index: {}]
  %s7 = inlined_call_operand.hbm [shape: f32[2,1,128], index: 7, kind: input, shape index: {}]
  %s8 = inlined_call_operand.vmem [shape: bf16[2,32,32], index: 8, kind: input, shape index: {}]
  %s9 = inlined_call_operand.vmem [shape: bf16[2,32,64], index: 9, kind: input, shape index: {}]
  %s10 = inlined_call_operand.vmem [shape: bf16[2,64,32], index: 10, kind: input, shape index: {}]
  %s11 = inlined_call_operand.hbm [shape: f32[2,1,64], index: 11, kind: input, shape index: {}]
  %s12 = inlined_call_operand.vmem [shape: f32[2,6,32], index: 12, kind: input, shape index: {}]
  %s13 = inlined_call_operand.vmem [shape: bf16[32,128], index: 13, kind: input, shape index: {}]
  %s14 = inlined_call_operand.hbm [shape: f32[1,128], index: 14, kind: input, shape index: {}]
  %s15 = inlined_call_operand.vmem [shape: f32[16,128], index: 15, kind: output, shape index: {}]
  %s16 = sld [smem:[#allocation0]]
  $region82: #{_lambda_.1} parent=0
    _
  %s18 = ssub.s32 1, %s16
  %s19 = scalar_select 0, %s18, %s16
  $region1: #{_lambda_.1} parent=0
    #allocation2 [shape = 'u8[1024]{0}', space=vmem, size = 0x400, scoped, tag = 'input window, operand 7, single buffered']
    #allocation3 [shape = 's32[1]{0}', space=sflag, size = 0x4, scoped, tag = 'scoped memory for _lambda_.1']
    #allocation4 [shape = 'u8[1024]{0}', space=vmem, size = 0x400, scoped, tag = 'input window, operand 11, single buffered']
    #allocation5 [shape = 's32[1]{0}', space=sflag, size = 0x4, scoped, tag = 'scoped memory for _lambda_.1']
    #allocation6 [shape = 'u8[512]{0}', space=vmem, size = 0x400, scoped, tag = 'input window, operand 14, single buffered']
    %20 = vsyncpa [#allocation3], 0
    %21 = vsyncpa [#allocation5], 0
    // Predicated region
    $region2: #{_lambda_.1} parent=1 // pred_check
      _
    $region3: #{_lambda_.1} parent=1 // pred_check_branch
      %23 = sbr.rel (0) target = $region5
    $region4: #{_lambda_.1} parent=1 // pred_region
      _
    $region5: #{_lambda_.1} parent=1 // pred_fallthru
      _
    // Predicated region
    $region6: #{_lambda_.1} parent=1 // pred_check
      _
    $region7: #{_lambda_.1} parent=1 // pred_check_branch
      %25 = sbr.rel (0) target = $region9
    $region8: #{_lambda_.1} parent=1 // pred_region
      _
    $region9: #{_lambda_.1} parent=1 // pred_fallthru
      _
    // Predicated region
    $region10: #{_lambda_.1} parent=1 // pred_check
      _
    $region11: #{_lambda_.1} parent=1 // pred_check_branch
      %27 = sbr.rel (0) target = $region13
    $region12: #{_lambda_.1} parent=1 // pred_region
      _
    $region13: #{_lambda_.1} parent=1 // pred_fallthru
      _
    // Predicated region
    $region14: #{_lambda_.1} parent=1 // pred_check
      _
    $region15: #{_lambda_.1} parent=1 // pred_check_branch
      %29 = sbr.rel (0) target = $region17
    $region16: #{_lambda_.1} parent=1 // pred_region
      _
    $region17: #{_lambda_.1} parent=1 // pred_fallthru
      _
    // Predicated region
    $region18: #{_lambda_.1} parent=1 // pred_check
      _
    $region19: #{_lambda_.1} parent=1 // pred_check_branch
      %31 = sbr.rel (0) target = $region21
    $region20: #{_lambda_.1} parent=1 // pred_region
      _
    $region21: #{_lambda_.1} parent=1 // pred_fallthru
      _
    // Predicated region
    $region22: #{_lambda_.1} parent=1 // pred_check
      _
    $region23: #{_lambda_.1} parent=1 // pred_check_branch
      %33 = sbr.rel (0) target = $region25
    $region24: #{_lambda_.1} parent=1 // pred_region
      _
    $region25: #{_lambda_.1} parent=1 // pred_fallthru
      _
    // Predicated region
    $region26: #{_lambda_.1} parent=1 // pred_check
      _
    $region27: #{_lambda_.1} parent=1 // pred_check_branch
      %35 = sbr.rel (0) target = $region29
    $region28: #{_lambda_.1} parent=1 // pred_region
      _
    $region29: #{_lambda_.1} parent=1 // pred_fallthru
      _
    // Predicated region
    $region30: #{_lambda_.1} parent=1 // pred_check
      _
    $region31: #{_lambda_.1} parent=1 // pred_check_branch
      %37 = sbr.rel (0) target = $region33
    $region32: #{_lambda_.1} parent=1 // pred_region
      %s39 = ssub.s32 32, 32
      %40 = vsyncadd [#allocation3], %s39
      %s41 = sshll.u32 [#allocation2], 4
      %s42 = int_to_ptr.vmem [resolvable:$true] %s41
      %47 = dma.hbm_to_vmem [thread:$0]  %s7, 32, %s42, [#allocation3], 16, 16, 1
    $region33: #{_lambda_.1} parent=1 // pred_fallthru
      _
    // Predicated region
    $region34: #{_lambda_.1} parent=1 // pred_check
      _
    $region35: #{_lambda_.1} parent=1 // pred_check_branch
      %49 = sbr.rel (0) target = $region37
    $region36: #{_lambda_.1} parent=1 // pred_region
      _
    $region37: #{_lambda_.1} parent=1 // pred_fallthru
      _
    // Predicated region
    $region38: #{_lambda_.1} parent=1 // pred_check
      _
    $region39: #{_lambda_.1} parent=1 // pred_check_branch
      %51 = sbr.rel (0) target = $region41
    $region40: #{_lambda_.1} parent=1 // pred_region
      _
    $region41: #{_lambda_.1} parent=1 // pred_fallthru
      _
    // Predicated region
    $region42: #{_lambda_.1} parent=1 // pred_check
      _
    $region43: #{_lambda_.1} parent=1 // pred_check_branch
      %53 = sbr.rel (0) target = $region45
    $region44: #{_lambda_.1} parent=1 // pred_region
      _
    $region45: #{_lambda_.1} parent=1 // pred_fallthru
      _
    // Predicated region
    $region46: #{_lambda_.1} parent=1 // pred_check
      _
    $region47: #{_lambda_.1} parent=1 // pred_check_branch
      %55 = sbr.rel (0) target = $region49
    $region48: #{_lambda_.1} parent=1 // pred_region
      %s57 = ssub.s32 32, 32
      %58 = vsyncadd [#allocation5], %s57
      %s59 = sshll.u32 [#allocation4], 4
      %s60 = int_to_ptr.vmem [resolvable:$true] %s59
      %65 = dma.hbm_to_vmem [thread:$0]  %s11, 32, %s60, [#allocation5], 16, 16, 1
    $region49: #{_lambda_.1} parent=1 // pred_fallthru
      _
    // Predicated region
    $region50: #{_lambda_.1} parent=1 // pred_check
      _
    $region51: #{_lambda_.1} parent=1 // pred_check_branch
      %67 = sbr.rel (0) target = $region53
    $region52: #{_lambda_.1} parent=1 // pred_region
      _
    $region53: #{_lambda_.1} parent=1 // pred_fallthru
      _
    // Predicated region
    $region54: #{_lambda_.1} parent=1 // pred_check
      _
    $region55: #{_lambda_.1} parent=1 // pred_check_branch
      %69 = sbr.rel (0) target = $region57
    $region56: #{_lambda_.1} parent=1 // pred_region
      _
    $region57: #{_lambda_.1} parent=1 // pred_fallthru
      _
    // Predicated region
    $region58: #{_lambda_.1} parent=1 // pred_check
      _
    $region59: #{_lambda_.1} parent=1 // pred_check_branch
      %71 = sbr.rel (0) target = $region61
    $region60: #{_lambda_.1} parent=1 // pred_region
      %s73 = ssub.s32 16, 16
      %74 = vsyncadd [#allocation5], %s73
      %s76 = sshll.u32 [#allocation6], 4
      %s77 = int_to_ptr.vmem [resolvable:$true] %s76
      %79 = dma.hbm_to_vmem [thread:$0]  %s14, 16, %s77, [#allocation5]
    $region61: #{_lambda_.1} parent=1 // pred_fallthru
      _
    // Predicated region
    $region62: #{_lambda_.1} parent=1 // pred_check
      _
    $region63: #{_lambda_.1} parent=1 // pred_check_branch
      %81 = sbr.rel (0) target = $region65
    $region64: #{_lambda_.1} parent=1 // pred_region
      %82 = dma.done [#allocation3], 32
    $region65: #{_lambda_.1} parent=1 // pred_fallthru
      _
    // Predicated region
    $region66: #{_lambda_.1} parent=1 // pred_check
      _
    $region67: #{_lambda_.1} parent=1 // pred_check_branch
      %84 = sbr.rel (0) target = $region69
    $region68: #{_lambda_.1} parent=1 // pred_region
      %85 = dma.done [#allocation5], 32
    $region69: #{_lambda_.1} parent=1 // pred_fallthru
      _
    // Predicated region
    $region70: #{_lambda_.1} parent=1 // pred_check
      _
    $region71: #{_lambda_.1} parent=1 // pred_check_branch
      %87 = sbr.rel (0) target = $region73
    $region72: #{_lambda_.1} parent=1 // pred_region
      %88 = dma.done [#allocation5], 16
    $region73: #{_lambda_.1} parent=1 // pred_fallthru
      _
    %v90 = vld [vmem:[%s5] sm:$0xf]
    %v91 = vld [vmem:[%s1] sm:$0xff]
    %v92 = vld [vmem:[%s1 + $0x8] sm:$0xff]
    %v93 = vpack.c.bf16 %v92, %v91
    %v94 = vld [vmem:[%s4] sm:$0x3]
    %v95 = vlaneseq
    %v96 = vshrl.u32 %v95, 7
    %v97 = vsub.s32 1, %v96
    %v98 = vrot.slane %v90, %v97
    %vm99 = vcmask 31744
    %v101 = vsel %vm99, %v93, 0
    %vm103 = vcmask 1041408
    %v105 = vsel %vm103, %v94, 0
    %107 = vmatprep.subr.bf16.mxu0 0
    %108 = vmatpush1.bf16.msra.mxu0 %v105
    %109 = vmatprep.subr.bf16.mxu0 0
    %110 = vmatpush1.bf16.msra.mxu0 0
    %111 = vmatprep.subr.bf16.mxu0 0
    %112 = vmatpush1.bf16.msra.mxu0 0
    %113 = vmatprep.subr.bf16.mxu0 0
    %114 = vmatpush1.bf16.msra.mxu0 0
    %115 = vmatprep.subr.bf16.mxu0 0
    %116 = vmatpush1.bf16.msra.mxu0 0
    %117 = vmatprep.subr.bf16.mxu0 0
    %118 = vmatpush1.bf16.msra.mxu0 0
    %119 = vmatprep.subr.bf16.mxu0 0
    %120 = vmatpush1.bf16.msra.mxu0 0
    %121 = vmatprep.subr.bf16.mxu0 0
    %122 = vmatpush1.bf16.msra.mxu0 0
    %123 = vmatprep.subr.bf16.mxu0 0
    %124 = vmatpush1.bf16.msra.mxu0 0
    %125 = vmatprep.subr.bf16.mxu0 0
    %126 = vmatpush1.bf16.msra.mxu0 0
    %127 = vmatprep.subr.bf16.mxu0 0
    %128 = vmatpush1.bf16.msra.mxu0 0
    %129 = vmatprep.subr.bf16.mxu0 0
    %130 = vmatpush1.bf16.msra.mxu0 0
    %131 = vmatprep.subr.bf16.mxu0 0
    %132 = vmatpush1.bf16.msra.mxu0 0
    %133 = vmatprep.subr.bf16.mxu0 0
    %134 = vmatpush1.bf16.msra.mxu0 0
    %135 = vmatprep.subr.bf16.mxu0 0
    %136 = vmatpush1.bf16.msra.mxu0 0
    %137 = vmatprep.subr.bf16.mxu0 0
    %138 = vmatpush1.bf16.msra.mxu0 0
    %139 = vmatprep.mubr.bf16.mxu0 0
    %140 = vmatmul.mubr.bf16.gmra.mrb[0].mxu0 %v101
    %v141 = vpop.f32.mrb[0].mxu0
    %v142 = vadd.f32 %v98, %v141
    %v143 = vpop.f32.mrb[0].mxu0
    %v144 = vpop.f32.mrb[0].mxu0
    %v145 = vadd.f32 %v98, %v144
    %v146 = vpop.f32.mrb[0].mxu0
    %147 = vdwg.mxu0
    %vm148 = vcmask 130048
    %v149 = vsel %vm148, %v142, 0.0
    %150 = vadd.xlane.f32.xlu0 %v149
    %v151 = vpop.xlane.xlu0 %150
    %v152 = vsel %vm148, %v145, 0.0
    %153 = vadd.xlane.f32.xlu0 %v152
    %v154 = vpop.xlane.xlu0 %153
    %v155 = vrcp.pop 16.0
    %v156 = vmul.f32 %v151, %v155
    %v157 = vmul.f32 %v154, %v155
    %v158 = vsub.f32 %v142, %v156
    %v159 = vsub.f32 %v145, %v157
    %v160 = vmul.f32 %v158, %v158
    %v161 = vmul.f32 %v159, %v159
    %v162 = vsel %vm148, %v160, 0.0
    %163 = vadd.xlane.f32.xlu0 %v162
    %v164 = vpop.xlane.xlu0 %163
    %v165 = vsel %vm148, %v161, 0.0
    %166 = vadd.xlane.f32.xlu0 %v165
    %v167 = vpop.xlane.xlu0 %166
    %v168 = vmul.f32 %v164, %v155
    %v169 = vmul.f32 %v167, %v155
    %v170 = vadd.f32 %v168, 1e-05
    %v171 = vadd.f32 %v169, 1e-05
    %v172 = vrsqrt.pop %v170
    %v173 = vrsqrt.pop %v171
    %v174 = vmul.f32 %v158, %v172
    %v175 = vmul.f32 %v159, %v173
    %v176 = vlaneseq
    %v177 = vshrl.u32 %v176, 7
    %v178 = vsub.s32 2, %v177
    %v179 = vrot.slane %v90, %v178
    %v180 = vmul.f32 %v174, %v179
    %v181 = vmul.f32 %v175, %v179
    %v182 = vlaneseq
    %v183 = vshrl.u32 %v182, 7
    %v184 = vsub.s32 3, %v183
    %v185 = vrot.slane %v90, %v184
    %v186 = vadd.f32 %v180, %v185
    %v187 = vadd.f32 %v181, %v185
    %v188 = vld [vmem:[%s0] sm:$0xff]
    %v189 = vld [vmem:[%s0 + $0x8] sm:$0xff]
    %v190 = vpack.c.bf16 %v189, %v188
    %v191 = vld [vmem:[%s3] sm:$0xf]
    %v192 = vlaneseq
    %v193 = vshrl.u32 %v192, 7
    %v194 = vsub.s32 0, %v193
    %v195 = vrot.slane %v90, %v194
    %vm196 = vcmask 64512
    %v198 = vsel %vm196, %v190, 0
    %vm200 = vcmask 1043456
    %v202 = vsel %vm200, %v191, 0
    %204 = vmatprep.subr.bf16.mxu0 0
    %205 = vmatpush1.bf16.msra.mxu0 %v202
    %206 = vmatprep.subr.bf16.mxu0 0
    %207 = vmatpush1.bf16.msra.mxu0 0
    %208 = vmatprep.subr.bf16.mxu0 0
    %209 = vmatpush1.bf16.msra.mxu0 0
    %210 = vmatprep.subr.bf16.mxu0 0
    %211 = vmatpush1.bf16.msra.mxu0 0
    %212 = vmatprep.subr.bf16.mxu0 0
    %213 = vmatpush1.bf16.msra.mxu0 0
    %214 = vmatprep.subr.bf16.mxu0 0
    %215 = vmatpush1.bf16.msra.mxu0 0
    %216 = vmatprep.subr.bf16.mxu0 0
    %217 = vmatpush1.bf16.msra.mxu0 0
    %218 = vmatprep.subr.bf16.mxu0 0
    %219 = vmatpush1.bf16.msra.mxu0 0
    %220 = vmatprep.subr.bf16.mxu0 0
    %221 = vmatpush1.bf16.msra.mxu0 0
    %222 = vmatprep.subr.bf16.mxu0 0
    %223 = vmatpush1.bf16.msra.mxu0 0
    %224 = vmatprep.subr.bf16.mxu0 0
    %225 = vmatpush1.bf16.msra.mxu0 0
    %226 = vmatprep.subr.bf16.mxu0 0
    %227 = vmatpush1.bf16.msra.mxu0 0
    %228 = vmatprep.subr.bf16.mxu0 0
    %229 = vmatpush1.bf16.msra.mxu0 0
    %230 = vmatprep.subr.bf16.mxu0 0
    %231 = vmatpush1.bf16.msra.mxu0 0
    %232 = vmatprep.subr.bf16.mxu0 0
    %233 = vmatpush1.bf16.msra.mxu0 0
    %234 = vmatprep.subr.bf16.mxu0 0
    %235 = vmatpush1.bf16.msra.mxu0 0
    %236 = vmatprep.mubr.bf16.mxu0 0
    %237 = vmatmul.mubr.bf16.gmra.mrb[0].mxu0 %v198
    %v238 = vpop.f32.mrb[0].mxu0
    %v239 = vadd.f32 %v195, %v238
    %v240 = vpop.f32.mrb[0].mxu0
    %v241 = vpop.f32.mrb[0].mxu0
    %v242 = vadd.f32 %v195, %v241
    %v243 = vpop.f32.mrb[0].mxu0
    %244 = vdwg.mxu0
    %247 = vrot.lane.b32.xlu0 %v186, 16
    %v248 = vpop.permute.xlu0 %247
    %249 = vrot.lane.b32.xlu0 %v187, 16
    %v250 = vpop.permute.xlu0 %249
    %v253 = vsel %vm148, %v239, %v248
    %v254 = vsel %vm148, %v242, %v250
    %v255 = vld [vmem:[%s2] sm:$0xf]
    %v256 = vld [vmem:[%s2 + $0x4] sm:$0xf]
    %v257 = vld [vmem:[%s12] sm:$0x3f]
    %v258 = vpack.c.bf16 %v254, %v253
    %v259 = vld [vmem:[%s6] sm:$0xf]
    %v260 = vld [vmem:[%s6 + $0x4] sm:$0xf]
    %v261 = vld [vmem:[%s6 + $0x8] sm:$0xf]
    %v262 = vld [vmem:[%s6 + $0xc] sm:$0xf]
    %v263 = vld [vmem:[#allocation2] sm:$0x1]
    %v265 = vlaneseq
    %v266 = vshrl.u32 %v265, 7
    %v267 = vsub.s32 0, %v266
    %v268 = vrot.slane %v263, %v267
    %v274 = vunpack.c.l.b16 %v259
    %v275 = vunpack.c.l.b16 %v260
    %v276 = vunpack.c.l.b16 %v261
    %v277 = vunpack.c.l.b16 %v262
    %v278 = vpack.c.b16 %v275, %v274
    %v279 = vpack.c.b16 %v277, %v276
    %vm282 = vcmask 261120
    %v284 = vsel %vm282, %v258, 0
    %286 = vmatprep.subr.bf16.mxu0 0
    %287 = vmatpush1.bf16.msra.mxu0 %v278
    %288 = vmatprep.subr.bf16.mxu0 0
    %289 = vmatpush1.bf16.msra.mxu0 %v279
    %290 = vmatprep.subr.bf16.mxu0 0
    %291 = vmatpush1.bf16.msra.mxu0 0
    %292 = vmatprep.subr.bf16.mxu0 0
    %293 = vmatpush1.bf16.msra.mxu0 0
    %294 = vmatprep.subr.bf16.mxu0 0
    %295 = vmatpush1.bf16.msra.mxu0 0
    %296 = vmatprep.subr.bf16.mxu0 0
    %297 = vmatpush1.bf16.msra.mxu0 0
    %298 = vmatprep.subr.bf16.mxu0 0
    %299 = vmatpush1.bf16.msra.mxu0 0
    %300 = vmatprep.subr.bf16.mxu0 0
    %301 = vmatpush1.bf16.msra.mxu0 0
    %302 = vmatprep.subr.bf16.mxu0 0
    %303 = vmatpush1.bf16.msra.mxu0 0
    %304 = vmatprep.subr.bf16.mxu0 0
    %305 = vmatpush1.bf16.msra.mxu0 0
    %306 = vmatprep.subr.bf16.mxu0 0
    %307 = vmatpush1.bf16.msra.mxu0 0
    %308 = vmatprep.subr.bf16.mxu0 0
    %309 = vmatpush1.bf16.msra.mxu0 0
    %310 = vmatprep.subr.bf16.mxu0 0
    %311 = vmatpush1.bf16.msra.mxu0 0
    %312 = vmatprep.subr.bf16.mxu0 0
    %313 = vmatpush1.bf16.msra.mxu0 0
    %314 = vmatprep.subr.bf16.mxu0 0
    %315 = vmatpush1.bf16.msra.mxu0 0
    %316 = vmatprep.subr.bf16.mxu0 0
    %317 = vmatpush1.bf16.msra.mxu0 0
    %318 = vmatprep.mubr.bf16.mxu0 0
    %319 = vmatmul.mubr.bf16.gmra.mrb[0].mxu0 %v284
    %v320 = vpop.f32.mrb[0].mxu0
    %v321 = vadd.f32 %v268, %v320
    %v322 = vpop.f32.mrb[0].mxu0
    %v323 = vpop.f32.mrb[0].mxu0
    %v324 = vadd.f32 %v268, %v323
    %v325 = vpop.f32.mrb[0].mxu0
    %326 = vdwg.mxu0
    %v327 = vpack.c.bf16 %v324, %v321
    %v330 = vunpack.c.l.b16 %v255
    %v331 = vunpack.c.l.b16 %v256
    %v332 = vpack.c.b16 %v331, %v330
    %v334 = vsel %vm148, %v332, 0
    %336 = vmatprep.subr.bf16.mxu0 0
    %337 = vmatpush1.bf16.msra.mxu0 %v327
    %338 = vmatprep.subr.bf16.mxu0 0
    %339 = vmatpush1.bf16.msra.mxu0 0
    %340 = vmatprep.subr.bf16.mxu0 0
    %341 = vmatpush1.bf16.msra.mxu0 0
    %342 = vmatprep.subr.bf16.mxu0 0
    %343 = vmatpush1.bf16.msra.mxu0 0
    %344 = vmatprep.subr.bf16.mxu0 0
    %345 = vmatpush1.bf16.msra.mxu0 0
    %346 = vmatprep.subr.bf16.mxu0 0
    %347 = vmatpush1.bf16.msra.mxu0 0
    %348 = vmatprep.subr.bf16.mxu0 0
    %349 = vmatpush1.bf16.msra.mxu0 0
    %350 = vmatprep.subr.bf16.mxu0 0
    %351 = vmatpush1.bf16.msra.mxu0 0
    %352 = vmatprep.subr.bf16.mxu0 0
    %353 = vmatpush1.bf16.msra.mxu0 0
    %354 = vmatprep.subr.bf16.mxu0 0
    %355 = vmatpush1.bf16.msra.mxu0 0
    %356 = vmatprep.subr.bf16.mxu0 0
    %357 = vmatpush1.bf16.msra.mxu0 0
    %358 = vmatprep.subr.bf16.mxu0 0
    %359 = vmatpush1.bf16.msra.mxu0 0
    %360 = vmatprep.subr.bf16.mxu0 0
    %361 = vmatpush1.bf16.msra.mxu0 0
    %362 = vmatprep.subr.bf16.mxu0 0
    %363 = vmatpush1.bf16.msra.mxu0 0
    %364 = vmatprep.subr.bf16.mxu0 0
    %365 = vmatpush1.bf16.msra.mxu0 0
    %366 = vmatprep.subr.bf16.mxu0 0
    %367 = vmatpush1.bf16.msra.mxu0 0
    %368 = vmatprep.mubr.bf16.mxu0 0
    %369 = vmatmul.mubr.bf16.gmra.mrb[0].mxu0 %v334
    %v370 = vpop.f32.mrb[0].mxu0
    %v371 = vadd.f32 %v253, %v370
    %v372 = vpop.f32.mrb[0].mxu0
    %v373 = vpop.f32.mrb[0].mxu0
    %v374 = vadd.f32 %v254, %v373
    %v375 = vpop.f32.mrb[0].mxu0
    %376 = vdwg.mxu0
    %v377 = vlaneseq
    %v378 = vshrl.u32 %v377, 7
    %v379 = vsub.s32 0, %v378
    %v380 = vrot.slane %v257, %v379
    %v381 = vmul.f32 %v371, %v380
    %v382 = vmul.f32 %v374, %v380
    %v383 = vlaneseq
    %v384 = vshrl.u32 %v383, 7
    %v385 = vsub.s32 1, %v384
    %v386 = vrot.slane %v257, %v385
    %v387 = vadd.f32 %v381, %v386
    %v388 = vadd.f32 %v382, %v386
    %390 = vrot.lane.b32.xlu0 %v327, 96
    %v391 = vpop.permute.xlu0 %390
    %392 = vrot.lane.b32.xlu0 %v327, 64
    %v393 = vpop.permute.xlu0 %392
    %v395 = vsel %vm282, %v391, 0
    %v398 = vsel %vm282, %v393, 0
    %400 = vmatprep.subr.bf16.mxu0 0
    %401 = vmatpush1.bf16.xpose.msra.mxu0 %v398
    %402 = vmatprep.subr.bf16.mxu0 0
    %403 = vmatpush1.bf16.xpose.msra.mxu0 0
    %404 = vmatprep.subr.bf16.mxu0 0
    %405 = vmatpush1.bf16.xpose.msra.mxu0 0
    %406 = vmatprep.subr.bf16.mxu0 0
    %407 = vmatpush1.bf16.xpose.msra.mxu0 0
    %408 = vmatprep.subr.bf16.mxu0 0
    %409 = vmatpush1.bf16.xpose.msra.mxu0 0
    %410 = vmatprep.subr.bf16.mxu0 0
    %411 = vmatpush1.bf16.xpose.msra.mxu0 0
    %412 = vmatprep.subr.bf16.mxu0 0
    %413 = vmatpush1.bf16.xpose.msra.mxu0 0
    %414 = vmatprep.subr.bf16.mxu0 0
    %415 = vmatpush1.bf16.xpose.msra.mxu0 0
    %416 = vmatprep.subr.bf16.mxu0 0
    %417 = vmatpush1.bf16.xpose.msra.mxu0 0
    %418 = vmatprep.subr.bf16.mxu0 0
    %419 = vmatpush1.bf16.xpose.msra.mxu0 0
    %420 = vmatprep.subr.bf16.mxu0 0
    %421 = vmatpush1.bf16.xpose.msra.mxu0 0
    %422 = vmatprep.subr.bf16.mxu0 0
    %423 = vmatpush1.bf16.xpose.msra.mxu0 0
    %424 = vmatprep.subr.bf16.mxu0 0
    %425 = vmatpush1.bf16.xpose.msra.mxu0 0
    %426 = vmatprep.subr.bf16.mxu0 0
    %427 = vmatpush1.bf16.xpose.msra.mxu0 0
    %428 = vmatprep.subr.bf16.mxu0 0
    %429 = vmatpush1.bf16.xpose.msra.mxu0 0
    %430 = vmatprep.subr.bf16.mxu0 0
    %431 = vmatpush1.bf16.xpose.msra.mxu0 0
    %432 = vmatprep.mubr.bf16.mxu0 0
    %433 = vmatmul.mubr.bf16.gmra.mrb[0].mxu0 %v395
    %v434 = vpop.f32.mrb[0].mxu0
    %v435 = vadd.f32 0.0, %v434
    %v436 = vpop.f32.mrb[0].mxu0
    %v437 = vpop.f32.mrb[0].mxu0
    %v438 = vadd.f32 0.0, %v437
    %v439 = vpop.f32.mrb[0].mxu0
    %440 = vdwg.mxu0
    %v441 = vsel %vm148, %v435, -inf
    %442 = vmax.xlane.f32.xlu0 %v441
    %v443 = vpop.xlane.xlu0 %442
    %v444 = vsel %vm148, %v438, -inf
    %445 = vmax.xlane.f32.xlu0 %v444
    %v446 = vpop.xlane.xlu0 %445
    %v447 = vsub.f32 %v435, %v443
    %v448 = vsub.f32 %v438, %v446
    %v449 = vmul.f32 %v447, 1.442695
    %v450 = vpow.pop %v449
    %v451 = vmul.f32 %v448, 1.442695
    %v452 = vpow.pop %v451
    %v453 = vsel %vm148, %v450, 0.0
    %454 = vadd.xlane.f32.xlu0 %v453
    %v455 = vpop.xlane.xlu0 %454
    %v456 = vsel %vm148, %v452, 0.0
    %457 = vadd.xlane.f32.xlu0 %v456
    %v458 = vpop.xlane.xlu0 %457
    %v459 = vrcp.pop %v455
    %v460 = vrcp.pop %v458
    %v461 = vmul.f32 %v450, %v459
    %v462 = vmul.f32 %v452, %v460
    %v463 = vpack.c.bf16 %v462, %v461
    %464 = vrot.lane.b32.xlu0 %v327, 32
    %v465 = vpop.permute.xlu0 %464
    %v468 = vsel %vm148, %v463, 0
    %470 = vmatprep.subr.bf16.mxu0 0
    %471 = vmatpush1.bf16.msra.mxu0 %v465
    %472 = vmatprep.subr.bf16.mxu0 0
    %473 = vmatpush1.bf16.msra.mxu0 0
    %474 = vmatprep.subr.bf16.mxu0 0
    %475 = vmatpush1.bf16.msra.mxu0 0
    %476 = vmatprep.subr.bf16.mxu0 0
    %477 = vmatpush1.bf16.msra.mxu0 0
    %478 = vmatprep.subr.bf16.mxu0 0
    %479 = vmatpush1.bf16.msra.mxu0 0
    %480 = vmatprep.subr.bf16.mxu0 0
    %481 = vmatpush1.bf16.msra.mxu0 0
    %482 = vmatprep.subr.bf16.mxu0 0
    %483 = vmatpush1.bf16.msra.mxu0 0
    %484 = vmatprep.subr.bf16.mxu0 0
    %485 = vmatpush1.bf16.msra.mxu0 0
    %486 = vmatprep.subr.bf16.mxu0 0
    %487 = vmatpush1.bf16.msra.mxu0 0
    %488 = vmatprep.subr.bf16.mxu0 0
    %489 = vmatpush1.bf16.msra.mxu0 0
    %490 = vmatprep.subr.bf16.mxu0 0
    %491 = vmatpush1.bf16.msra.mxu0 0
    %492 = vmatprep.subr.bf16.mxu0 0
    %493 = vmatpush1.bf16.msra.mxu0 0
    %494 = vmatprep.subr.bf16.mxu0 0
    %495 = vmatpush1.bf16.msra.mxu0 0
    %496 = vmatprep.subr.bf16.mxu0 0
    %497 = vmatpush1.bf16.msra.mxu0 0
    %498 = vmatprep.subr.bf16.mxu0 0
    %499 = vmatpush1.bf16.msra.mxu0 0
    %500 = vmatprep.subr.bf16.mxu0 0
    %501 = vmatpush1.bf16.msra.mxu0 0
    %502 = vmatprep.mubr.bf16.mxu0 0
    %503 = vmatmul.mubr.bf16.gmra.mrb[0].mxu0 %v468
    %v504 = vpop.f32.mrb[0].mxu0
    %v505 = vadd.f32 0.0, %v504
    %v506 = vpop.f32.mrb[0].mxu0
    %v507 = vpop.f32.mrb[0].mxu0
    %v508 = vadd.f32 0.0, %v507
    %v509 = vpop.f32.mrb[0].mxu0
    %510 = vdwg.mxu0
    %v511 = vpack.c.bf16 %v508, %v505
    %v512 = vld [vmem:[%s8] sm:$0xf]
    %v513 = vld [vmem:[%s8 + $0x4] sm:$0xf]
    %v514 = vld [vmem:[%s8 + $0x8] sm:$0xf]
    %v515 = vld [vmem:[%s8 + $0xc] sm:$0xf]
    %v520 = vunpack.c.l.b16 %v512
    %v521 = vunpack.c.l.b16 %v513
    %v522 = vunpack.c.l.b16 %v514
    %v523 = vunpack.c.l.b16 %v515
    %v524 = vpack.c.b16 %v521, %v520
    %v525 = vpack.c.b16 %v523, %v522
    %v529 = vsel %vm282, %v511, 0
    %531 = vmatprep.subr.bf16.mxu0 0
    %532 = vmatpush1.bf16.msra.mxu0 %v524
    %533 = vmatprep.subr.bf16.mxu0 0
    %534 = vmatpush1.bf16.msra.mxu0 %v525
    %535 = vmatprep.subr.bf16.mxu0 0
    %536 = vmatpush1.bf16.msra.mxu0 0
    %537 = vmatprep.subr.bf16.mxu0 0
    %538 = vmatpush1.bf16.msra.mxu0 0
    %539 = vmatprep.subr.bf16.mxu0 0
    %540 = vmatpush1.bf16.msra.mxu0 0
    %541 = vmatprep.subr.bf16.mxu0 0
    %542 = vmatpush1.bf16.msra.mxu0 0
    %543 = vmatprep.subr.bf16.mxu0 0
    %544 = vmatpush1.bf16.msra.mxu0 0
    %545 = vmatprep.subr.bf16.mxu0 0
    %546 = vmatpush1.bf16.msra.mxu0 0
    %547 = vmatprep.subr.bf16.mxu0 0
    %548 = vmatpush1.bf16.msra.mxu0 0
    %549 = vmatprep.subr.bf16.mxu0 0
    %550 = vmatpush1.bf16.msra.mxu0 0
    %551 = vmatprep.subr.bf16.mxu0 0
    %552 = vmatpush1.bf16.msra.mxu0 0
    %553 = vmatprep.subr.bf16.mxu0 0
    %554 = vmatpush1.bf16.msra.mxu0 0
    %555 = vmatprep.subr.bf16.mxu0 0
    %556 = vmatpush1.bf16.msra.mxu0 0
    %557 = vmatprep.subr.bf16.mxu0 0
    %558 = vmatpush1.bf16.msra.mxu0 0
    %559 = vmatprep.subr.bf16.mxu0 0
    %560 = vmatpush1.bf16.msra.mxu0 0
    %561 = vmatprep.subr.bf16.mxu0 0
    %562 = vmatpush1.bf16.msra.mxu0 0
    %563 = vmatprep.mubr.bf16.mxu0 0
    %564 = vmatmul.mubr.bf16.gmra.mrb[0].mxu0 %v529
    %v565 = vpop.f32.mrb[0].mxu0
    %v566 = vadd.f32 %v253, %v565
    %v567 = vpop.f32.mrb[0].mxu0
    %v568 = vpop.f32.mrb[0].mxu0
    %v569 = vadd.f32 %v254, %v568
    %v570 = vpop.f32.mrb[0].mxu0
    %571 = vdwg.mxu0
    %v572 = vlaneseq
    %v573 = vshrl.u32 %v572, 7
    %v574 = vsub.s32 2, %v573
    %v575 = vrot.slane %v257, %v574
    %v576 = vmul.f32 %v566, %v575
    %v577 = vmul.f32 %v569, %v575
    %v578 = vlaneseq
    %v579 = vshrl.u32 %v578, 7
    %v580 = vsub.s32 3, %v579
    %v581 = vrot.slane %v257, %v580
    %v582 = vadd.f32 %v576, %v581
    %v583 = vadd.f32 %v577, %v581
    %v584 = vadd.f32 %v387, %v582
    %v585 = vadd.f32 %v388, %v583
    %v586 = vpack.c.bf16 %v585, %v584
    %v587 = vld [vmem:[%s9] sm:$0xf]
    %v588 = vld [vmem:[%s9 + $0x4] sm:$0xf]
    %v589 = vld [vmem:[%s9 + $0x8] sm:$0xf]
    %v590 = vld [vmem:[%s9 + $0xc] sm:$0xf]
    %v591 = vld [vmem:[#allocation4] sm:$0x1]
    %v593 = vlaneseq
    %v594 = vshrl.u32 %v593, 7
    %v595 = vsub.s32 0, %v594
    %v596 = vrot.slane %v591, %v595
    %v602 = vunpack.c.l.b16 %v587
    %v603 = vunpack.c.l.b16 %v588
    %v604 = vunpack.c.l.b16 %v589
    %v605 = vunpack.c.l.b16 %v590
    %v606 = vpack.c.b16 %v603, %v602
    %v607 = vpack.c.b16 %v605, %v604
    %v611 = vsel %vm282, %v586, 0
    %613 = vmatprep.subr.bf16.mxu0 0
    %614 = vmatpush1.bf16.msra.mxu0 %v606
    %615 = vmatprep.subr.bf16.mxu0 0
    %616 = vmatpush1.bf16.msra.mxu0 %v607
    %617 = vmatprep.subr.bf16.mxu0 0
    %618 = vmatpush1.bf16.msra.mxu0 0
    %619 = vmatprep.subr.bf16.mxu0 0
    %620 = vmatpush1.bf16.msra.mxu0 0
    %621 = vmatprep.subr.bf16.mxu0 0
    %622 = vmatpush1.bf16.msra.mxu0 0
    %623 = vmatprep.subr.bf16.mxu0 0
    %624 = vmatpush1.bf16.msra.mxu0 0
    %625 = vmatprep.subr.bf16.mxu0 0
    %626 = vmatpush1.bf16.msra.mxu0 0
    %627 = vmatprep.subr.bf16.mxu0 0
    %628 = vmatpush1.bf16.msra.mxu0 0
    %629 = vmatprep.subr.bf16.mxu0 0
    %630 = vmatpush1.bf16.msra.mxu0 0
    %631 = vmatprep.subr.bf16.mxu0 0
    %632 = vmatpush1.bf16.msra.mxu0 0
    %633 = vmatprep.subr.bf16.mxu0 0
    %634 = vmatpush1.bf16.msra.mxu0 0
    %635 = vmatprep.subr.bf16.mxu0 0
    %636 = vmatpush1.bf16.msra.mxu0 0
    %637 = vmatprep.subr.bf16.mxu0 0
    %638 = vmatpush1.bf16.msra.mxu0 0
    %639 = vmatprep.subr.bf16.mxu0 0
    %640 = vmatpush1.bf16.msra.mxu0 0
    %641 = vmatprep.subr.bf16.mxu0 0
    %642 = vmatpush1.bf16.msra.mxu0 0
    %643 = vmatprep.subr.bf16.mxu0 0
    %644 = vmatpush1.bf16.msra.mxu0 0
    %645 = vmatprep.mubr.bf16.mxu0 0
    %646 = vmatmul.mubr.bf16.gmra.mrb[0].mxu0 %v611
    %v647 = vpop.f32.mrb[0].mxu0
    %v648 = vadd.f32 %v596, %v647
    %v649 = vpop.f32.mrb[0].mxu0
    %v650 = vpop.f32.mrb[0].mxu0
    %v651 = vadd.f32 %v596, %v650
    %v652 = vpop.f32.mrb[0].mxu0
    %653 = vdwg.mxu0
    %v654 = vmax.f32 %v648, 0.0
    %v655 = vmax.f32 %v651, 0.0
    %v656 = vpack.c.bf16 %v655, %v654
    %v657 = vld [vmem:[%s10] sm:$0xf]
    %v658 = vld [vmem:[%s10 + $0x4] sm:$0xf]
    %v659 = vld [vmem:[%s10 + $0x8] sm:$0xf]
    %v660 = vld [vmem:[%s10 + $0xc] sm:$0xf]
    %v661 = vld [vmem:[%s10 + $0x10] sm:$0xf]
    %v662 = vld [vmem:[%s10 + $0x14] sm:$0xf]
    %v663 = vld [vmem:[%s10 + $0x18] sm:$0xf]
    %v664 = vld [vmem:[%s10 + $0x1c] sm:$0xf]
    %v673 = vunpack.c.l.b16 %v657
    %v674 = vunpack.c.l.b16 %v658
    %v675 = vunpack.c.l.b16 %v659
    %v676 = vunpack.c.l.b16 %v660
    %v677 = vunpack.c.l.b16 %v661
    %v678 = vunpack.c.l.b16 %v662
    %v679 = vunpack.c.l.b16 %v663
    %v680 = vunpack.c.l.b16 %v664
    %v681 = vpack.c.b16 %v674, %v673
    %v682 = vpack.c.b16 %v676, %v675
    %v683 = vpack.c.b16 %v678, %v677
    %v684 = vpack.c.b16 %v680, %v679
    %vm689 = vcmask 523264
    %v691 = vsel %vm689, %v656, 0
    %693 = vmatprep.subr.bf16.mxu0 0
    %694 = vmatpush1.bf16.msra.mxu0 %v681
    %695 = vmatprep.subr.bf16.mxu0 0
    %696 = vmatpush1.bf16.msra.mxu0 %v682
    %697 = vmatprep.subr.bf16.mxu0 0
    %698 = vmatpush1.bf16.msra.mxu0 %v683
    %699 = vmatprep.subr.bf16.mxu0 0
    %700 = vmatpush1.bf16.msra.mxu0 %v684
    %701 = vmatprep.subr.bf16.mxu0 0
    %702 = vmatpush1.bf16.msra.mxu0 0
    %703 = vmatprep.subr.bf16.mxu0 0
    %704 = vmatpush1.bf16.msra.mxu0 0
    %705 = vmatprep.subr.bf16.mxu0 0
    %706 = vmatpush1.bf16.msra.mxu0 0
    %707 = vmatprep.subr.bf16.mxu0 0
    %708 = vmatpush1.bf16.msra.mxu0 0
    %709 = vmatprep.subr.bf16.mxu0 0
    %710 = vmatpush1.bf16.msra.mxu0 0
    %711 = vmatprep.subr.bf16.mxu0 0
    %712 = vmatpush1.bf16.msra.mxu0 0
    %713 = vmatprep.subr.bf16.mxu0 0
    %714 = vmatpush1.bf16.msra.mxu0 0
    %715 = vmatprep.subr.bf16.mxu0 0
    %716 = vmatpush1.bf16.msra.mxu0 0
    %717 = vmatprep.subr.bf16.mxu0 0
    %718 = vmatpush1.bf16.msra.mxu0 0
    %719 = vmatprep.subr.bf16.mxu0 0
    %720 = vmatpush1.bf16.msra.mxu0 0
    %721 = vmatprep.subr.bf16.mxu0 0
    %722 = vmatpush1.bf16.msra.mxu0 0
    %723 = vmatprep.subr.bf16.mxu0 0
    %724 = vmatpush1.bf16.msra.mxu0 0
    %725 = vmatprep.mubr.bf16.mxu0 0
    %726 = vmatmul.mubr.bf16.gmra.mrb[0].mxu0 %v691
    %v727 = vpop.f32.mrb[0].mxu0
    %v728 = vadd.f32 0.0, %v727
    %v729 = vpop.f32.mrb[0].mxu0
    %v730 = vpop.f32.mrb[0].mxu0
    %v731 = vadd.f32 0.0, %v730
    %v732 = vpop.f32.mrb[0].mxu0
    %733 = vdwg.mxu0
    %v734 = vadd.f32 %v584, %v728
    %v735 = vadd.f32 %v585, %v731
    %v736 = vlaneseq
    %v737 = vshrl.u32 %v736, 7
    %v738 = vsub.s32 4, %v737
    %v739 = vrot.slane %v257, %v738
    %v740 = vmul.f32 %v734, %v739
    %v741 = vmul.f32 %v735, %v739
    %v742 = vlaneseq
    %v743 = vshrl.u32 %v742, 7
    %v744 = vsub.s32 5, %v743
    %v745 = vrot.slane %v257, %v744
    %v746 = vadd.f32 %v740, %v745
    %v747 = vadd.f32 %v741, %v745
    %s748 = scalar_lea.vmem %s12, 8
    %v749 = vld [vmem:[%s748] sm:$0x3f]
    %v750 = vpack.c.bf16 %v747, %v746
    %s751 = scalar_lea.vmem %s6, 16
    %v752 = vld [vmem:[%s751] sm:$0xf]
    %v753 = vld [vmem:[%s751 + $0x4] sm:$0xf]
    %v754 = vld [vmem:[%s751 + $0x8] sm:$0xf]
    %v755 = vld [vmem:[%s751 + $0xc] sm:$0xf]
    %s756 = scalar_lea.vmem [#allocation2], 1
    %v757 = vld [vmem:[%s756] sm:$0x1]
    %v759 = vlaneseq
    %v760 = vshrl.u32 %v759, 7
    %v761 = vsub.s32 0, %v760
    %v762 = vrot.slane %v757, %v761
    %v768 = vunpack.c.l.b16 %v752
    %v769 = vunpack.c.l.b16 %v753
    %v770 = vunpack.c.l.b16 %v754
    %v771 = vunpack.c.l.b16 %v755
    %v772 = vpack.c.b16 %v769, %v768
    %v773 = vpack.c.b16 %v771, %v770
    %v777 = vsel %vm282, %v750, 0
    %779 = vmatprep.subr.bf16.mxu0 0
    %780 = vmatpush1.bf16.msra.mxu0 %v772
    %781 = vmatprep.subr.bf16.mxu0 0
    %782 = vmatpush1.bf16.msra.mxu0 %v773
    %783 = vmatprep.subr.bf16.mxu0 0
    %784 = vmatpush1.bf16.msra.mxu0 0
    %785 = vmatprep.subr.bf16.mxu0 0
    %786 = vmatpush1.bf16.msra.mxu0 0
    %787 = vmatprep.subr.bf16.mxu0 0
    %788 = vmatpush1.bf16.msra.mxu0 0
    %789 = vmatprep.subr.bf16.mxu0 0
    %790 = vmatpush1.bf16.msra.mxu0 0
    %791 = vmatprep.subr.bf16.mxu0 0
    %792 = vmatpush1.bf16.msra.mxu0 0
    %793 = vmatprep.subr.bf16.mxu0 0
    %794 = vmatpush1.bf16.msra.mxu0 0
    %795 = vmatprep.subr.bf16.mxu0 0
    %796 = vmatpush1.bf16.msra.mxu0 0
    %797 = vmatprep.subr.bf16.mxu0 0
    %798 = vmatpush1.bf16.msra.mxu0 0
    %799 = vmatprep.subr.bf16.mxu0 0
    %800 = vmatpush1.bf16.msra.mxu0 0
    %801 = vmatprep.subr.bf16.mxu0 0
    %802 = vmatpush1.bf16.msra.mxu0 0
    %803 = vmatprep.subr.bf16.mxu0 0
    %804 = vmatpush1.bf16.msra.mxu0 0
    %805 = vmatprep.subr.bf16.mxu0 0
    %806 = vmatpush1.bf16.msra.mxu0 0
    %807 = vmatprep.subr.bf16.mxu0 0
    %808 = vmatpush1.bf16.msra.mxu0 0
    %809 = vmatprep.subr.bf16.mxu0 0
    %810 = vmatpush1.bf16.msra.mxu0 0
    %811 = vmatprep.mubr.bf16.mxu0 0
    %812 = vmatmul.mubr.bf16.gmra.mrb[0].mxu0 %v777
    %v813 = vpop.f32.mrb[0].mxu0
    %v814 = vadd.f32 %v762, %v813
    %v815 = vpop.f32.mrb[0].mxu0
    %v816 = vpop.f32.mrb[0].mxu0
    %v817 = vadd.f32 %v762, %v816
    %v818 = vpop.f32.mrb[0].mxu0
    %819 = vdwg.mxu0
    %v820 = vpack.c.bf16 %v817, %v814
    %821 = vmatprep.subr.bf16.mxu0 0
    %822 = vmatpush1.bf16.msra.mxu0 %v820
    %823 = vmatprep.subr.bf16.mxu0 0
    %824 = vmatpush1.bf16.msra.mxu0 0
    %825 = vmatprep.subr.bf16.mxu0 0
    %826 = vmatpush1.bf16.msra.mxu0 0
    %827 = vmatprep.subr.bf16.mxu0 0
    %828 = vmatpush1.bf16.msra.mxu0 0
    %829 = vmatprep.subr.bf16.mxu0 0
    %830 = vmatpush1.bf16.msra.mxu0 0
    %831 = vmatprep.subr.bf16.mxu0 0
    %832 = vmatpush1.bf16.msra.mxu0 0
    %833 = vmatprep.subr.bf16.mxu0 0
    %834 = vmatpush1.bf16.msra.mxu0 0
    %835 = vmatprep.subr.bf16.mxu0 0
    %836 = vmatpush1.bf16.msra.mxu0 0
    %837 = vmatprep.subr.bf16.mxu0 0
    %838 = vmatpush1.bf16.msra.mxu0 0
    %839 = vmatprep.subr.bf16.mxu0 0
    %840 = vmatpush1.bf16.msra.mxu0 0
    %841 = vmatprep.subr.bf16.mxu0 0
    %842 = vmatpush1.bf16.msra.mxu0 0
    %843 = vmatprep.subr.bf16.mxu0 0
    %844 = vmatpush1.bf16.msra.mxu0 0
    %845 = vmatprep.subr.bf16.mxu0 0
    %846 = vmatpush1.bf16.msra.mxu0 0
    %847 = vmatprep.subr.bf16.mxu0 0
    %848 = vmatpush1.bf16.msra.mxu0 0
    %849 = vmatprep.subr.bf16.mxu0 0
    %850 = vmatpush1.bf16.msra.mxu0 0
    %851 = vmatprep.subr.bf16.mxu0 0
    %852 = vmatpush1.bf16.msra.mxu0 0
    %853 = vmatprep.mubr.bf16.mxu0 0
    %854 = vmatmul.mubr.bf16.gmra.mrb[0].mxu0 %v334
    %v855 = vpop.f32.mrb[0].mxu0
    %v856 = vadd.f32 %v746, %v855
    %v857 = vpop.f32.mrb[0].mxu0
    %v858 = vpop.f32.mrb[0].mxu0
    %v859 = vadd.f32 %v747, %v858
    %v860 = vpop.f32.mrb[0].mxu0
    %861 = vdwg.mxu0
    %v862 = vlaneseq
    %v863 = vshrl.u32 %v862, 7
    %v864 = vsub.s32 0, %v863
    %v865 = vrot.slane %v749, %v864
    %v866 = vmul.f32 %v856, %v865
    %v867 = vmul.f32 %v859, %v865
    %v868 = vlaneseq
    %v869 = vshrl.u32 %v868, 7
    %v870 = vsub.s32 1, %v869
    %v871 = vrot.slane %v749, %v870
    %v872 = vadd.f32 %v866, %v871
    %v873 = vadd.f32 %v867, %v871
    %875 = vrot.lane.b32.xlu0 %v820, 96
    %v876 = vpop.permute.xlu0 %875
    %877 = vrot.lane.b32.xlu0 %v820, 64
    %v878 = vpop.permute.xlu0 %877
    %v880 = vsel %vm282, %v876, 0
    %v883 = vsel %vm282, %v878, 0
    %885 = vmatprep.subr.bf16.mxu0 0
    %886 = vmatpush1.bf16.xpose.msra.mxu0 %v883
    %887 = vmatprep.subr.bf16.mxu0 0
    %888 = vmatpush1.bf16.xpose.msra.mxu0 0
    %889 = vmatprep.subr.bf16.mxu0 0
    %890 = vmatpush1.bf16.xpose.msra.mxu0 0
    %891 = vmatprep.subr.bf16.mxu0 0
    %892 = vmatpush1.bf16.xpose.msra.mxu0 0
    %893 = vmatprep.subr.bf16.mxu0 0
    %894 = vmatpush1.bf16.xpose.msra.mxu0 0
    %895 = vmatprep.subr.bf16.mxu0 0
    %896 = vmatpush1.bf16.xpose.msra.mxu0 0
    %897 = vmatprep.subr.bf16.mxu0 0
    %898 = vmatpush1.bf16.xpose.msra.mxu0 0
    %899 = vmatprep.subr.bf16.mxu0 0
    %900 = vmatpush1.bf16.xpose.msra.mxu0 0
    %901 = vmatprep.subr.bf16.mxu0 0
    %902 = vmatpush1.bf16.xpose.msra.mxu0 0
    %903 = vmatprep.subr.bf16.mxu0 0
    %904 = vmatpush1.bf16.xpose.msra.mxu0 0
    %905 = vmatprep.subr.bf16.mxu0 0
    %906 = vmatpush1.bf16.xpose.msra.mxu0 0
    %907 = vmatprep.subr.bf16.mxu0 0
    %908 = vmatpush1.bf16.xpose.msra.mxu0 0
    %909 = vmatprep.subr.bf16.mxu0 0
    %910 = vmatpush1.bf16.xpose.msra.mxu0 0
    %911 = vmatprep.subr.bf16.mxu0 0
    %912 = vmatpush1.bf16.xpose.msra.mxu0 0
    %913 = vmatprep.subr.bf16.mxu0 0
    %914 = vmatpush1.bf16.xpose.msra.mxu0 0
    %915 = vmatprep.subr.bf16.mxu0 0
    %916 = vmatpush1.bf16.xpose.msra.mxu0 0
    %917 = vmatprep.mubr.bf16.mxu0 0
    %918 = vmatmul.mubr.bf16.gmra.mrb[0].mxu0 %v880
    %v919 = vpop.f32.mrb[0].mxu0
    %v920 = vadd.f32 0.0, %v919
    %v921 = vpop.f32.mrb[0].mxu0
    %v922 = vpop.f32.mrb[0].mxu0
    %v923 = vadd.f32 0.0, %v922
    %v924 = vpop.f32.mrb[0].mxu0
    %925 = vdwg.mxu0
    %v926 = vsel %vm148, %v920, -inf
    %927 = vmax.xlane.f32.xlu0 %v926
    %v928 = vpop.xlane.xlu0 %927
    %v929 = vsel %vm148, %v923, -inf
    %930 = vmax.xlane.f32.xlu0 %v929
    %v931 = vpop.xlane.xlu0 %930
    %v932 = vsub.f32 %v920, %v928
    %v933 = vsub.f32 %v923, %v931
    %v934 = vmul.f32 %v932, 1.442695
    %v935 = vpow.pop %v934
    %v936 = vmul.f32 %v933, 1.442695
    %v937 = vpow.pop %v936
    %v938 = vsel %vm148, %v935, 0.0
    %939 = vadd.xlane.f32.xlu0 %v938
    %v940 = vpop.xlane.xlu0 %939
    %v941 = vsel %vm148, %v937, 0.0
    %942 = vadd.xlane.f32.xlu0 %v941
    %v943 = vpop.xlane.xlu0 %942
    %v944 = vrcp.pop %v940
    %v945 = vrcp.pop %v943
    %v946 = vmul.f32 %v935, %v944
    %v947 = vmul.f32 %v937, %v945
    %v948 = vpack.c.bf16 %v947, %v946
    %949 = vrot.lane.b32.xlu0 %v820, 32
    %v950 = vpop.permute.xlu0 %949
    %v953 = vsel %vm148, %v948, 0
    %955 = vmatprep.subr.bf16.mxu0 0
    %956 = vmatpush1.bf16.msra.mxu0 %v950
    %957 = vmatprep.subr.bf16.mxu0 0
    %958 = vmatpush1.bf16.msra.mxu0 0
    %959 = vmatprep.subr.bf16.mxu0 0
    %960 = vmatpush1.bf16.msra.mxu0 0
    %961 = vmatprep.subr.bf16.mxu0 0
    %962 = vmatpush1.bf16.msra.mxu0 0
    %963 = vmatprep.subr.bf16.mxu0 0
    %964 = vmatpush1.bf16.msra.mxu0 0
    %965 = vmatprep.subr.bf16.mxu0 0
    %966 = vmatpush1.bf16.msra.mxu0 0
    %967 = vmatprep.subr.bf16.mxu0 0
    %968 = vmatpush1.bf16.msra.mxu0 0
    %969 = vmatprep.subr.bf16.mxu0 0
    %970 = vmatpush1.bf16.msra.mxu0 0
    %971 = vmatprep.subr.bf16.mxu0 0
    %972 = vmatpush1.bf16.msra.mxu0 0
    %973 = vmatprep.subr.bf16.mxu0 0
    %974 = vmatpush1.bf16.msra.mxu0 0
    %975 = vmatprep.subr.bf16.mxu0 0
    %976 = vmatpush1.bf16.msra.mxu0 0
    %977 = vmatprep.subr.bf16.mxu0 0
    %978 = vmatpush1.bf16.msra.mxu0 0
    %979 = vmatprep.subr.bf16.mxu0 0
    %980 = vmatpush1.bf16.msra.mxu0 0
    %981 = vmatprep.subr.bf16.mxu0 0
    %982 = vmatpush1.bf16.msra.mxu0 0
    %983 = vmatprep.subr.bf16.mxu0 0
    %984 = vmatpush1.bf16.msra.mxu0 0
    %985 = vmatprep.subr.bf16.mxu0 0
    %986 = vmatpush1.bf16.msra.mxu0 0
    %987 = vmatprep.mubr.bf16.mxu0 0
    %988 = vmatmul.mubr.bf16.gmra.mrb[0].mxu0 %v953
    %v989 = vpop.f32.mrb[0].mxu0
    %v990 = vadd.f32 0.0, %v989
    %v991 = vpop.f32.mrb[0].mxu0
    %v992 = vpop.f32.mrb[0].mxu0
    %v993 = vadd.f32 0.0, %v992
    %v994 = vpop.f32.mrb[0].mxu0
    %995 = vdwg.mxu0
    %v996 = vpack.c.bf16 %v993, %v990
    %s997 = scalar_lea.vmem %s8, 16
    %v998 = vld [vmem:[%s997] sm:$0xf]
    %v999 = vld [vmem:[%s997 + $0x4] sm:$0xf]
    %v1000 = vld [vmem:[%s997 + $0x8] sm:$0xf]
    %v1001 = vld [vmem:[%s997 + $0xc] sm:$0xf]
    %v1006 = vunpack.c.l.b16 %v998
    %v1007 = vunpack.c.l.b16 %v999
    %v1008 = vunpack.c.l.b16 %v1000
    %v1009 = vunpack.c.l.b16 %v1001
    %v1010 = vpack.c.b16 %v1007, %v1006
    %v1011 = vpack.c.b16 %v1009, %v1008
    %v1015 = vsel %vm282, %v996, 0
    %1017 = vmatprep.subr.bf16.mxu0 0
    %1018 = vmatpush1.bf16.msra.mxu0 %v1010
    %1019 = vmatprep.subr.bf16.mxu0 0
    %1020 = vmatpush1.bf16.msra.mxu0 %v1011
    %1021 = vmatprep.subr.bf16.mxu0 0
    %1022 = vmatpush1.bf16.msra.mxu0 0
    %1023 = vmatprep.subr.bf16.mxu0 0
    %1024 = vmatpush1.bf16.msra.mxu0 0
    %1025 = vmatprep.subr.bf16.mxu0 0
    %1026 = vmatpush1.bf16.msra.mxu0 0
    %1027 = vmatprep.subr.bf16.mxu0 0
    %1028 = vmatpush1.bf16.msra.mxu0 0
    %1029 = vmatprep.subr.bf16.mxu0 0
    %1030 = vmatpush1.bf16.msra.mxu0 0
    %1031 = vmatprep.subr.bf16.mxu0 0
    %1032 = vmatpush1.bf16.msra.mxu0 0
    %1033 = vmatprep.subr.bf16.mxu0 0
    %1034 = vmatpush1.bf16.msra.mxu0 0
    %1035 = vmatprep.subr.bf16.mxu0 0
    %1036 = vmatpush1.bf16.msra.mxu0 0
    %1037 = vmatprep.subr.bf16.mxu0 0
    %1038 = vmatpush1.bf16.msra.mxu0 0
    %1039 = vmatprep.subr.bf16.mxu0 0
    %1040 = vmatpush1.bf16.msra.mxu0 0
    %1041 = vmatprep.subr.bf16.mxu0 0
    %1042 = vmatpush1.bf16.msra.mxu0 0
    %1043 = vmatprep.subr.bf16.mxu0 0
    %1044 = vmatpush1.bf16.msra.mxu0 0
    %1045 = vmatprep.subr.bf16.mxu0 0
    %1046 = vmatpush1.bf16.msra.mxu0 0
    %1047 = vmatprep.subr.bf16.mxu0 0
    %1048 = vmatpush1.bf16.msra.mxu0 0
    %1049 = vmatprep.mubr.bf16.mxu0 0
    %1050 = vmatmul.mubr.bf16.gmra.mrb[0].mxu0 %v1015
    %v1051 = vpop.f32.mrb[0].mxu0
    %v1052 = vadd.f32 %v746, %v1051
    %v1053 = vpop.f32.mrb[0].mxu0
    %v1054 = vpop.f32.mrb[0].mxu0
    %v1055 = vadd.f32 %v747, %v1054
    %v1056 = vpop.f32.mrb[0].mxu0
    %1057 = vdwg.mxu0
    %v1058 = vlaneseq
    %v1059 = vshrl.u32 %v1058, 7
    %v1060 = vsub.s32 2, %v1059
    %v1061 = vrot.slane %v749, %v1060
    %v1062 = vmul.f32 %v1052, %v1061
    %v1063 = vmul.f32 %v1055, %v1061
    %v1064 = vlaneseq
    %v1065 = vshrl.u32 %v1064, 7
    %v1066 = vsub.s32 3, %v1065
    %v1067 = vrot.slane %v749, %v1066
    %v1068 = vadd.f32 %v1062, %v1067
    %v1069 = vadd.f32 %v1063, %v1067
    %v1070 = vadd.f32 %v872, %v1068
    %v1071 = vadd.f32 %v873, %v1069
    %v1072 = vpack.c.bf16 %v1071, %v1070
    %s1073 = scalar_lea.vmem %s9, 16
    %v1074 = vld [vmem:[%s1073] sm:$0xf]
    %v1075 = vld [vmem:[%s1073 + $0x4] sm:$0xf]
    %v1076 = vld [vmem:[%s1073 + $0x8] sm:$0xf]
    %v1077 = vld [vmem:[%s1073 + $0xc] sm:$0xf]
    %s1078 = scalar_lea.vmem [#allocation4], 1
    %v1079 = vld [vmem:[%s1078] sm:$0x1]
    %v1081 = vlaneseq
    %v1082 = vshrl.u32 %v1081, 7
    %v1083 = vsub.s32 0, %v1082
    %v1084 = vrot.slane %v1079, %v1083
    %v1090 = vunpack.c.l.b16 %v1074
    %v1091 = vunpack.c.l.b16 %v1075
    %v1092 = vunpack.c.l.b16 %v1076
    %v1093 = vunpack.c.l.b16 %v1077
    %v1094 = vpack.c.b16 %v1091, %v1090
    %v1095 = vpack.c.b16 %v1093, %v1092
    %v1099 = vsel %vm282, %v1072, 0
    %1101 = vmatprep.subr.bf16.mxu0 0
    %1102 = vmatpush1.bf16.msra.mxu0 %v1094
    %1103 = vmatprep.subr.bf16.mxu0 0
    %1104 = vmatpush1.bf16.msra.mxu0 %v1095
    %1105 = vmatprep.subr.bf16.mxu0 0
    %1106 = vmatpush1.bf16.msra.mxu0 0
    %1107 = vmatprep.subr.bf16.mxu0 0
    %1108 = vmatpush1.bf16.msra.mxu0 0
    %1109 = vmatprep.subr.bf16.mxu0 0
    %1110 = vmatpush1.bf16.msra.mxu0 0
    %1111 = vmatprep.subr.bf16.mxu0 0
    %1112 = vmatpush1.bf16.msra.mxu0 0
    %1113 = vmatprep.subr.bf16.mxu0 0
    %1114 = vmatpush1.bf16.msra.mxu0 0
    %1115 = vmatprep.subr.bf16.mxu0 0
    %1116 = vmatpush1.bf16.msra.mxu0 0
    %1117 = vmatprep.subr.bf16.mxu0 0
    %1118 = vmatpush1.bf16.msra.mxu0 0
    %1119 = vmatprep.subr.bf16.mxu0 0
    %1120 = vmatpush1.bf16.msra.mxu0 0
    %1121 = vmatprep.subr.bf16.mxu0 0
    %1122 = vmatpush1.bf16.msra.mxu0 0
    %1123 = vmatprep.subr.bf16.mxu0 0
    %1124 = vmatpush1.bf16.msra.mxu0 0
    %1125 = vmatprep.subr.bf16.mxu0 0
    %1126 = vmatpush1.bf16.msra.mxu0 0
    %1127 = vmatprep.subr.bf16.mxu0 0
    %1128 = vmatpush1.bf16.msra.mxu0 0
    %1129 = vmatprep.subr.bf16.mxu0 0
    %1130 = vmatpush1.bf16.msra.mxu0 0
    %1131 = vmatprep.subr.bf16.mxu0 0
    %1132 = vmatpush1.bf16.msra.mxu0 0
    %1133 = vmatprep.mubr.bf16.mxu0 0
    %1134 = vmatmul.mubr.bf16.gmra.mrb[0].mxu0 %v1099
    %v1135 = vpop.f32.mrb[0].mxu0
    %v1136 = vadd.f32 %v1084, %v1135
    %v1137 = vpop.f32.mrb[0].mxu0
    %v1138 = vpop.f32.mrb[0].mxu0
    %v1139 = vadd.f32 %v1084, %v1138
    %v1140 = vpop.f32.mrb[0].mxu0
    %1141 = vdwg.mxu0
    %v1142 = vmax.f32 %v1136, 0.0
    %v1143 = vmax.f32 %v1139, 0.0
    %v1144 = vpack.c.bf16 %v1143, %v1142
    %s1145 = scalar_lea.vmem %s10, 32
    %v1146 = vld [vmem:[%s1145] sm:$0xf]
    %v1147 = vld [vmem:[%s1145 + $0x4] sm:$0xf]
    %v1148 = vld [vmem:[%s1145 + $0x8] sm:$0xf]
    %v1149 = vld [vmem:[%s1145 + $0xc] sm:$0xf]
    %v1150 = vld [vmem:[%s1145 + $0x10] sm:$0xf]
    %v1151 = vld [vmem:[%s1145 + $0x14] sm:$0xf]
    %v1152 = vld [vmem:[%s1145 + $0x18] sm:$0xf]
    %v1153 = vld [vmem:[%s1145 + $0x1c] sm:$0xf]
    %v1162 = vunpack.c.l.b16 %v1146
    %v1163 = vunpack.c.l.b16 %v1147
    %v1164 = vunpack.c.l.b16 %v1148
    %v1165 = vunpack.c.l.b16 %v1149
    %v1166 = vunpack.c.l.b16 %v1150
    %v1167 = vunpack.c.l.b16 %v1151
    %v1168 = vunpack.c.l.b16 %v1152
    %v1169 = vunpack.c.l.b16 %v1153
    %v1170 = vpack.c.b16 %v1163, %v1162
    %v1171 = vpack.c.b16 %v1165, %v1164
    %v1172 = vpack.c.b16 %v1167, %v1166
    %v1173 = vpack.c.b16 %v1169, %v1168
    %v1179 = vsel %vm689, %v1144, 0
    %1181 = vmatprep.subr.bf16.mxu0 0
    %1182 = vmatpush1.bf16.msra.mxu0 %v1170
    %1183 = vmatprep.subr.bf16.mxu0 0
    %1184 = vmatpush1.bf16.msra.mxu0 %v1171
    %1185 = vmatprep.subr.bf16.mxu0 0
    %1186 = vmatpush1.bf16.msra.mxu0 %v1172
    %1187 = vmatprep.subr.bf16.mxu0 0
    %1188 = vmatpush1.bf16.msra.mxu0 %v1173
    %1189 = vmatprep.subr.bf16.mxu0 0
    %1190 = vmatpush1.bf16.msra.mxu0 0
    %1191 = vmatprep.subr.bf16.mxu0 0
    %1192 = vmatpush1.bf16.msra.mxu0 0
    %1193 = vmatprep.subr.bf16.mxu0 0
    %1194 = vmatpush1.bf16.msra.mxu0 0
    %1195 = vmatprep.subr.bf16.mxu0 0
    %1196 = vmatpush1.bf16.msra.mxu0 0
    %1197 = vmatprep.subr.bf16.mxu0 0
    %1198 = vmatpush1.bf16.msra.mxu0 0
    %1199 = vmatprep.subr.bf16.mxu0 0
    %1200 = vmatpush1.bf16.msra.mxu0 0
    %1201 = vmatprep.subr.bf16.mxu0 0
    %1202 = vmatpush1.bf16.msra.mxu0 0
    %1203 = vmatprep.subr.bf16.mxu0 0
    %1204 = vmatpush1.bf16.msra.mxu0 0
    %1205 = vmatprep.subr.bf16.mxu0 0
    %1206 = vmatpush1.bf16.msra.mxu0 0
    %1207 = vmatprep.subr.bf16.mxu0 0
    %1208 = vmatpush1.bf16.msra.mxu0 0
    %1209 = vmatprep.subr.bf16.mxu0 0
    %1210 = vmatpush1.bf16.msra.mxu0 0
    %1211 = vmatprep.subr.bf16.mxu0 0
    %1212 = vmatpush1.bf16.msra.mxu0 0
    %1213 = vmatprep.mubr.bf16.mxu0 0
    %1214 = vmatmul.mubr.bf16.gmra.mrb[0].mxu0 %v1179
    %v1215 = vpop.f32.mrb[0].mxu0
    %v1216 = vadd.f32 0.0, %v1215
    %v1217 = vpop.f32.mrb[0].mxu0
    %v1218 = vpop.f32.mrb[0].mxu0
    %v1219 = vadd.f32 0.0, %v1218
    %v1220 = vpop.f32.mrb[0].mxu0
    %1221 = vdwg.mxu0
    %v1222 = vadd.f32 %v1070, %v1216
    %v1223 = vadd.f32 %v1071, %v1219
    %v1224 = vlaneseq
    %v1225 = vshrl.u32 %v1224, 7
    %v1226 = vsub.s32 4, %v1225
    %v1227 = vrot.slane %v749, %v1226
    %v1228 = vmul.f32 %v1222, %v1227
    %v1229 = vmul.f32 %v1223, %v1227
    %v1230 = vlaneseq
    %v1231 = vshrl.u32 %v1230, 7
    %v1232 = vsub.s32 5, %v1231
    %v1233 = vrot.slane %v749, %v1232
    %v1234 = vadd.f32 %v1228, %v1233
    %v1235 = vadd.f32 %v1229, %v1233
    %v1236 = vpack.c.bf16 %v1235, %v1234
    %v1237 = vld [vmem:[%s13] sm:$0xf]
    %v1238 = vld [vmem:[%s13 + $0x4] sm:$0xf]
    %v1239 = vld [vmem:[%s13 + $0x8] sm:$0xf]
    %v1240 = vld [vmem:[%s13 + $0xc] sm:$0xf]
    %v1241 = vld [vmem:[#allocation6] sm:$0x1]
    %v1243 = vlaneseq
    %v1244 = vshrl.u32 %v1243, 7
    %v1245 = vsub.s32 0, %v1244
    %v1246 = vrot.slane %v1241, %v1245
    %v1252 = vunpack.c.l.b16 %v1237
    %v1253 = vunpack.c.l.b16 %v1238
    %v1254 = vunpack.c.l.b16 %v1239
    %v1255 = vunpack.c.l.b16 %v1240
    %v1256 = vpack.c.b16 %v1253, %v1252
    %v1257 = vpack.c.b16 %v1255, %v1254
    %v1261 = vsel %vm282, %v1236, 0
    %1263 = vmatprep.subr.bf16.mxu0 0
    %1264 = vmatpush1.bf16.msra.mxu0 %v1256
    %1265 = vmatprep.subr.bf16.mxu0 0
    %1266 = vmatpush1.bf16.msra.mxu0 %v1257
    %1267 = vmatprep.subr.bf16.mxu0 0
    %1268 = vmatpush1.bf16.msra.mxu0 0
    %1269 = vmatprep.subr.bf16.mxu0 0
    %1270 = vmatpush1.bf16.msra.mxu0 0
    %1271 = vmatprep.subr.bf16.mxu0 0
    %1272 = vmatpush1.bf16.msra.mxu0 0
    %1273 = vmatprep.subr.bf16.mxu0 0
    %1274 = vmatpush1.bf16.msra.mxu0 0
    %1275 = vmatprep.subr.bf16.mxu0 0
    %1276 = vmatpush1.bf16.msra.mxu0 0
    %1277 = vmatprep.subr.bf16.mxu0 0
    %1278 = vmatpush1.bf16.msra.mxu0 0
    %1279 = vmatprep.subr.bf16.mxu0 0
    %1280 = vmatpush1.bf16.msra.mxu0 0
    %1281 = vmatprep.subr.bf16.mxu0 0
    %1282 = vmatpush1.bf16.msra.mxu0 0
    %1283 = vmatprep.subr.bf16.mxu0 0
    %1284 = vmatpush1.bf16.msra.mxu0 0
    %1285 = vmatprep.subr.bf16.mxu0 0
    %1286 = vmatpush1.bf16.msra.mxu0 0
    %1287 = vmatprep.subr.bf16.mxu0 0
    %1288 = vmatpush1.bf16.msra.mxu0 0
    %1289 = vmatprep.subr.bf16.mxu0 0
    %1290 = vmatpush1.bf16.msra.mxu0 0
    %1291 = vmatprep.subr.bf16.mxu0 0
    %1292 = vmatpush1.bf16.msra.mxu0 0
    %1293 = vmatprep.subr.bf16.mxu0 0
    %1294 = vmatpush1.bf16.msra.mxu0 0
    %1295 = vmatprep.mubr.bf16.mxu0 0
    %1296 = vmatmul.mubr.bf16.gmra.mrb[0].mxu0 %v1261
    %v1297 = vpop.f32.mrb[0].mxu0
    %v1298 = vadd.f32 %v1246, %v1297
    %v1299 = vpop.f32.mrb[0].mxu0
    %v1300 = vpop.f32.mrb[0].mxu0
    %v1301 = vadd.f32 %v1246, %v1300
    %v1302 = vpop.f32.mrb[0].mxu0
    %1303 = vdwg.mxu0
    %1304 = vmax.xlane.f32.xlu0 %v1298
    %v1305 = vpop.xlane.xlu0 %1304
    %1306 = vmax.xlane.f32.xlu0 %v1301
    %v1307 = vpop.xlane.xlu0 %1306
    %v1308 = vsub.f32 %v1298, %v1305
    %v1309 = vsub.f32 %v1301, %v1307
    %v1310 = vmul.f32 %v1308, 1.442695
    %v1311 = vpow.pop %v1310
    %v1312 = vmul.f32 %v1309, 1.442695
    %v1313 = vpow.pop %v1312
    %1314 = vadd.xlane.f32.xlu0 %v1311
    %v1315 = vpop.xlane.xlu0 %1314
    %1316 = vadd.xlane.f32.xlu0 %v1313
    %v1317 = vpop.xlane.xlu0 %1316
    %v1318 = vlog2.pop %v1315
    %v1319 = vmul.f32 %v1318, 0.6931472
    %v1320 = vlog2.pop %v1317
    %v1321 = vmul.f32 %v1320, 0.6931472
    %v1322 = vsub.f32 %v1308, %v1319
    %v1323 = vsub.f32 %v1309, %v1321
    %1324 = vst [vmem:[%s15] sm:$0xff] %v1322
    %1325 = vst [vmem:[%s15 + $0x8] sm:$0xff] %v1323
    // Predicated region
    $region74: #{_lambda_.1} parent=1 // pred_check
      _
    $region75: #{_lambda_.1} parent=1 // pred_check_branch
      %1327 = sbr.rel (0) target = $region77
    $region76: #{_lambda_.1} parent=1 // pred_region
      _
    $region77: #{_lambda_.1} parent=1 // pred_fallthru
      _
    // Predicated region
    $region78: #{_lambda_.1} parent=1 // pred_check
      _
    $region79: #{_lambda_.1} parent=1 // pred_check_branch
      %1329 = sbr.rel (0) target = $region81
    $region80: #{_lambda_.1} parent=1 // pred_region
      _
    $region81: #{_lambda_.1} parent=1 // pred_fallthru
      _
    %1330 = vsyncpa [#allocation3], 1
    %1331 = vsyncpa [#allocation5], 1

</llo_original>
